<compile_context>
chip_gen: v7x
topology: tpu7x:2x2x1
jax: 0.10.0
libtpu: 0.0.40
codegen_flags: <defaults>
</compile_context>

<pallas_src>
import functools

import jax
import jax.numpy as jnp
import numpy as np
from jax import lax
from jax.experimental import pallas as pl
from jax.experimental.pallas import tpu as pltpu


# ------------------------------ Pallas kernel -------------------------------

def _fused_lstm_kernel(x_ref, *args, T, B, H, num_layers):
    """Fused multi-layer LSTM + linear head.

    Argument layout (after x_ref):
      per layer: wih_t (D_l,4H) bf16, whh_t (H,4H) bf16, bias (1,4H) f32
                 [gate order i|f|o|g]
      then:      wlin_t (H, O_pad) bf16, blin (1, O_pad) f32
      then:      out_ref (T*B, O_pad) f32
      scratch:   xproj_sc (T*B, 4H) f32, seq_sc (T*B, H) f32
    """
    num_w = 3 * num_layers + 2
    w_refs = args[:num_w]
    out_ref = args[num_w]
    xproj_sc, seq_sc = args[num_w + 1:]

    wlin_ref = w_refs[3 * num_layers]
    blin_ref = w_refs[3 * num_layers + 1]

    H3 = 3 * H

    def cell(gates, c_prev):
        # gates: (B, 4H) f32, order [i|f|o|g]
        sig = jax.nn.sigmoid(gates[:, :H3])       # one EUP pass over i,f,o
        g_g = jnp.tanh(gates[:, H3:])             # one EUP pass over g
        i_g = sig[:, :H]
        f_g = sig[:, H:2 * H]
        o_g = sig[:, 2 * H:H3]
        if c_prev is None:                        # peeled t=0: c_0 == 0
            c_new = i_g * g_g
        else:
            c_new = f_g * c_prev + i_g * g_g
        h_new = o_g * jnp.tanh(c_new)
        return h_new, c_new

    cur = x_ref[...]                              # (T*B, D_in) bf16, time-major

    for layer in range(num_layers):
        wih = w_refs[3 * layer][...]              # (D_l, 4H) bf16
        whh = w_refs[3 * layer + 1][...]          # (H, 4H)  bf16, vreg-resident
        b = w_refs[3 * layer + 2][...]            # (1, 4H)  f32

        # Time-parallel input projection hoisted out of the recurrence:
        # one MXU matmul for all timesteps (bf16 in, f32 accumulate).
        xproj_sc[...] = (
            jnp.dot(cur, wih, preferred_element_type=jnp.float32) + b)

        # Peeled step t = 0: h_0 = c_0 = 0 -> no recurrent matmul.
        h, c = cell(xproj_sc[0:B, :], None)       # h, c: (B, H) f32, in vregs
        seq_sc[0:B, :] = h

        # Serial recurrence; only h_{t-1} @ W_hh left inside the loop.
        # T is small -> fully unrolled with static row slices.
        for t in range(1, T):
            gates = xproj_sc[t * B:(t + 1) * B, :] + jnp.dot(
                h.astype(jnp.bfloat16), whh,
                preferred_element_type=jnp.float32)
            h, c = cell(gates, c)
            seq_sc[t * B:(t + 1) * B, :] = h      # store off the serial chain

        cur = seq_sc[...].astype(jnp.bfloat16)    # (T*B, H) input to next stage

    # Fused linear head, written lane-dense into the padded output block.
    out_ref[...] = (
        jnp.dot(cur, wlin_ref[...], preferred_element_type=jnp.float32)
        + blin_ref[...]).astype(out_ref.dtype)


# -------------------------------- Wrappers ----------------------------------

def _reorder_gate_rows(w):
    """PyTorch packs gates as [i|f|g|o]; reorder to [i|f|o|g]."""
    H = w.shape[0] // 4
    return jnp.concatenate([w[: 2 * H], w[3 * H:], w[2 * H: 3 * H]], axis=0)


def lstm_module_forward(x_btd, lstm_params, w_lin, b_lin):
    """Full module forward. x_btd: (B, T, in_channels), batch_first like PyTorch."""
    B, T, D = x_btd.shape
    H = lstm_params[0][1].shape[1]
    O = w_lin.shape[0]
    O_pad = pl.cdiv(O, 128) * 128                 # lane-dense output block
    num_layers = len(lstm_params)

    # time-major, flattened for the hoisted projection: (T*B, D), bf16 operands.
    x_tm = (jnp.swapaxes(jnp.asarray(x_btd, jnp.float32), 0, 1)
            .reshape(T * B, D).astype(jnp.bfloat16))

    flat_w = []
    for (w_ih, w_hh, b_ih, b_hh) in lstm_params:
        flat_w.append(jnp.asarray(_reorder_gate_rows(w_ih).T, jnp.bfloat16))  # (D_l,4H)
        flat_w.append(jnp.asarray(_reorder_gate_rows(w_hh).T, jnp.bfloat16))  # (H,4H)
        flat_w.append(jnp.asarray(
            _reorder_gate_rows(b_ih + b_hh)[None, :], jnp.float32))           # (1,4H)
    w_lin_p = (jnp.zeros((H, O_pad), jnp.float32)
               .at[:, :O].set(jnp.asarray(w_lin, jnp.float32).T)
               .astype(jnp.bfloat16))                                         # (H,O_pad)
    b_lin_p = (jnp.zeros((1, O_pad), jnp.float32)
               .at[:, :O].set(jnp.asarray(b_lin, jnp.float32)[None, :]))      # (1,O_pad)
    flat_w += [w_lin_p, b_lin_p]

    kernel = functools.partial(
        _fused_lstm_kernel, T=T, B=B, H=H, num_layers=num_layers)

    out2d = pl.pallas_call(
        kernel,
        out_shape=jax.ShapeDtypeStruct((T * B, O_pad), jnp.float32),
        scratch_shapes=[
            pltpu.VMEM((T * B, 4 * H), jnp.float32),   # hoisted input projection
            pltpu.VMEM((T * B, H), jnp.float32),       # per-layer hidden sequence
        ],
        compiler_params=pltpu.CompilerParams(
            vmem_limit_bytes=32 * 1024 * 1024),
    )(x_tm, *flat_w)

    out = jnp.swapaxes(out2d.reshape(T, B, O_pad), 0, 1)  # (B, T, O_pad)
    return out[:, :, :O]


# ------------------------------- Reference ----------------------------------

def lstm_forward_ref(x_btd, lstm_params, w_lin, b_lin):
    seq = jnp.asarray(x_btd, jnp.float32)
    for (w_ih, w_hh, b_ih, b_hh) in lstm_params:
        B, T, _ = seq.shape
        H = w_hh.shape[1]

        def step(carry, x_t):
            h, c = carry
            gates = x_t @ w_ih.T + h @ w_hh.T + b_ih + b_hh
            i, f, g, o = jnp.split(gates, 4, axis=-1)
            i, f, g, o = (jax.nn.sigmoid(i), jax.nn.sigmoid(f),
                          jnp.tanh(g), jax.nn.sigmoid(o))
            c = f * c + i * g
            h = o * jnp.tanh(c)
            return (h, c), h

        init = (jnp.zeros((B, H), jnp.float32), jnp.zeros((B, H), jnp.float32))
        _, hs = lax.scan(step, init, jnp.swapaxes(seq, 0, 1))
        seq = jnp.swapaxes(hs, 0, 1)
    return seq @ w_lin.T + b_lin


# ---------------------------------- Main -------------------------------------

if __name__ == "__main__":
    in_channels, hidden_channels, out_channels, num_layers = 4, 32, 4, 2
    B, T = 2, 8

    key = jax.random.PRNGKey(0)
    k_x, key = jax.random.split(key)
    x = jax.random.normal(k_x, (B, T, in_channels), dtype=jnp.float32)

    # nn.LSTM default init: uniform(-1/sqrt(H), 1/sqrt(H)).
    bound = 1.0 / np.sqrt(hidden_channels)
    lstm_params = []
    layer_in = in_channels
    for _ in range(num_layers):
        key, k1, k2, k3, k4 = jax.random.split(key, 5)
        w_ih = jax.random.uniform(k1, (4 * hidden_channels, layer_in),
                                  minval=-bound, maxval=bound, dtype=jnp.float32)
        w_hh = jax.random.uniform(k2, (4 * hidden_channels, hidden_channels),
                                  minval=-bound, maxval=bound, dtype=jnp.float32)
        b_ih = jax.random.uniform(k3, (4 * hidden_channels,),
                                  minval=-bound, maxval=bound, dtype=jnp.float32)
        b_hh = jax.random.uniform(k4, (4 * hidden_channels,),
                                  minval=-bound, maxval=bound, dtype=jnp.float32)
        lstm_params.append((w_ih, w_hh, b_ih, b_hh))
        layer_in = hidden_channels

    # Sanity check of the fused kernel with a NON-zero head (exercises the
    # whole numeric path).  Tolerance accounts for bf16 matmul operands vs the
    # f32 reference (the module itself is f64, which TPU cannot vectorize).
    key, k5, k6 = jax.random.split(key, 3)
    w_rand = jax.random.normal(k5, (out_channels, hidden_channels), jnp.float32) * 0.1
    b_rand = jax.random.normal(k6, (out_channels,), jnp.float32) * 0.1
    out_chk = jax.block_until_ready(lstm_module_forward(x, lstm_params, w_rand, b_rand))
    ref_chk = jax.block_until_ready(lstm_forward_ref(x, lstm_params, w_rand, b_rand))
    assert out_chk.shape == (B, T, out_channels), out_chk.shape
    np.testing.assert_allclose(np.asarray(out_chk), np.asarray(ref_chk),
                               atol=3e-2, rtol=3e-2)

    # Module-faithful forward: LinearZeroInit => zero weight and bias => output 0.
    w_lin = jnp.zeros((out_channels, hidden_channels), jnp.float32)
    b_lin = jnp.zeros((out_channels,), jnp.float32)
    out = jax.block_until_ready(lstm_module_forward(x, lstm_params, w_lin, b_lin))
    ref = jax.block_until_ready(lstm_forward_ref(x, lstm_params, w_lin, b_lin))
    assert out.shape == (B, T, out_channels), out.shape
    np.testing.assert_allclose(np.asarray(out), np.asarray(ref), atol=1e-6, rtol=1e-6)

    print("KERNEL_OK")
</pallas_src>

<mosaic_0001>
module attributes {stable_mosaic.version = 11 : i64} {
  func.func @_fused_lstm_kernel(%arg0: memref<16x4xbf16, #tpu.memory_space<vmem>>, %arg1: memref<4x128xbf16, #tpu.memory_space<vmem>>, %arg2: memref<32x128xbf16, #tpu.memory_space<vmem>>, %arg3: memref<1x128xf32, #tpu.memory_space<vmem>>, %arg4: memref<32x128xbf16, #tpu.memory_space<vmem>>, %arg5: memref<32x128xbf16, #tpu.memory_space<vmem>>, %arg6: memref<1x128xf32, #tpu.memory_space<vmem>>, %arg7: memref<32x128xbf16, #tpu.memory_space<vmem>>, %arg8: memref<1x128xf32, #tpu.memory_space<vmem>>, %arg9: memref<16x128xf32, #tpu.memory_space<vmem>>, %arg10: memref<16x128xf32, #tpu.memory_space<vmem>>, %arg11: memref<16x32xf32, #tpu.memory_space<vmem>>) attributes {dimension_semantics = [], scalar_prefetch = 0 : i64, scratch_operands = 2 : i64, tpu.core_type = #tpu.core_type<tc>} {
    %c0 = arith.constant 0 : index
    %c0_0 = arith.constant 0 : index
    %0 = vector.load %arg0[%c0, %c0_0] : memref<16x4xbf16, #tpu.memory_space<vmem>>, vector<16x4xbf16>
    %c0_1 = arith.constant 0 : index
    %c0_2 = arith.constant 0 : index
    %1 = vector.load %arg1[%c0_1, %c0_2] : memref<4x128xbf16, #tpu.memory_space<vmem>>, vector<4x128xbf16>
    %c0_3 = arith.constant 0 : index
    %c0_4 = arith.constant 0 : index
    %2 = vector.load %arg2[%c0_3, %c0_4] : memref<32x128xbf16, #tpu.memory_space<vmem>>, vector<32x128xbf16>
    %c0_5 = arith.constant 0 : index
    %c0_6 = arith.constant 0 : index
    %3 = vector.load %arg3[%c0_5, %c0_6] : memref<1x128xf32, #tpu.memory_space<vmem>>, vector<1x128xf32>
    %cst = arith.constant dense<0.000000e+00> : vector<16x128xf32>
    %4 = tpu.matmul %0, %1, %cst {dimension_numbers = #tpu.dot_dimension_numbers<[1], [0], [0], [1], [0, 0, 1, 1], [], []>} : vector<16x4xbf16>, vector<4x128xbf16>, vector<16x128xf32> -> vector<16x128xf32>
    %5 = vector.broadcast %3 : vector<1x128xf32> to vector<16x128xf32>
    %6 = arith.addf %4, %5 : vector<16x128xf32>
    %c0_7 = arith.constant 0 : index
    %c0_8 = arith.constant 0 : index
    %7 = vector.load %arg10[%c0_7, %c0_8] : memref<16x128xf32, #tpu.memory_space<vmem>>, vector<16x128xf32>
    tpu.vector_store %arg10[%c0_7, %c0_8], %6 {strides = array<i32>} : memref<16x128xf32, #tpu.memory_space<vmem>>, vector<16x128xf32>,
    %c0_9 = arith.constant 0 : index
    %c0_10 = arith.constant 0 : index
    %8 = vector.load %arg10[%c0_9, %c0_10] : memref<16x128xf32, #tpu.memory_space<vmem>>, vector<2x128xf32>
    %9 = vector.extract_strided_slice %8 {offsets = [0, 0], sizes = [2, 96], strides = [1, 1]} : vector<2x128xf32> to vector<2x96xf32>
    %10 = arith.negf %9 : vector<2x96xf32>
    %11 = math.exp %10 : vector<2x96xf32>
    %cst_11 = arith.constant 1.000000e+00 : f32
    %12 = vector.broadcast %cst_11 : f32 to vector<2x96xf32>
    %13 = arith.addf %12, %11 : vector<2x96xf32>
    %14 = arith.divf %12, %13 : vector<2x96xf32>
    %15 = vector.extract_strided_slice %8 {offsets = [0, 96], sizes = [2, 32], strides = [1, 1]} : vector<2x128xf32> to vector<2x32xf32>
    %16 = math.tanh %15 : vector<2x32xf32>
    %17 = vector.extract_strided_slice %14 {offsets = [0, 0], sizes = [2, 32], strides = [1, 1]} : vector<2x96xf32> to vector<2x32xf32>
    %18 = vector.extract_strided_slice %14 {offsets = [0, 64], sizes = [2, 32], strides = [1, 1]} : vector<2x96xf32> to vector<2x32xf32>
    %19 = arith.mulf %17, %16 : vector<2x32xf32>
    %20 = math.tanh %19 : vector<2x32xf32>
    %21 = arith.mulf %18, %20 : vector<2x32xf32>
    %c0_12 = arith.constant 0 : index
    %c0_13 = arith.constant 0 : index
    %22 = vector.load %arg11[%c0_12, %c0_13] : memref<16x32xf32, #tpu.memory_space<vmem>>, vector<2x32xf32>
    tpu.vector_store %arg11[%c0_12, %c0_13], %21 {strides = array<i32>} : memref<16x32xf32, #tpu.memory_space<vmem>>, vector<2x32xf32>,
    %c2 = arith.constant 2 : index
    %c0_14 = arith.constant 0 : index
    %23 = vector.load %arg10[%c2, %c0_14] : memref<16x128xf32, #tpu.memory_space<vmem>>, vector<2x128xf32>
    %24 = arith.truncf %21 : vector<2x32xf32> to vector<2x32xbf16>
    %cst_15 = arith.constant dense<0.000000e+00> : vector<2x128xf32>
    %25 = tpu.matmul %24, %2, %cst_15 {dimension_numbers = #tpu.dot_dimension_numbers<[1], [0], [0], [1], [0, 0, 1, 1], [], []>} : vector<2x32xbf16>, vector<32x128xbf16>, vector<2x128xf32> -> vector<2x128xf32>
    %26 = arith.addf %23, %25 : vector<2x128xf32>
    %27 = vector.extract_strided_slice %26 {offsets = [0, 0], sizes = [2, 96], strides = [1, 1]} : vector<2x128xf32> to vector<2x96xf32>
    %28 = arith.negf %27 : vector<2x96xf32>
    %29 = math.exp %28 : vector<2x96xf32>
    %cst_16 = arith.constant 1.000000e+00 : f32
    %30 = vector.broadcast %cst_16 : f32 to vector<2x96xf32>
    %31 = arith.addf %30, %29 : vector<2x96xf32>
    %32 = arith.divf %30, %31 : vector<2x96xf32>
    %33 = vector.extract_strided_slice %26 {offsets = [0, 96], sizes = [2, 32], strides = [1, 1]} : vector<2x128xf32> to vector<2x32xf32>
    %34 = math.tanh %33 : vector<2x32xf32>
    %35 = vector.extract_strided_slice %32 {offsets = [0, 0], sizes = [2, 32], strides = [1, 1]} : vector<2x96xf32> to vector<2x32xf32>
    %36 = vector.extract_strided_slice %32 {offsets = [0, 32], sizes = [2, 32], strides = [1, 1]} : vector<2x96xf32> to vector<2x32xf32>
    %37 = vector.extract_strided_slice %32 {offsets = [0, 64], sizes = [2, 32], strides = [1, 1]} : vector<2x96xf32> to vector<2x32xf32>
    %38 = arith.mulf %36, %19 : vector<2x32xf32>
    %39 = arith.mulf %35, %34 : vector<2x32xf32>
    %40 = arith.addf %38, %39 : vector<2x32xf32>
    %41 = math.tanh %40 : vector<2x32xf32>
    %42 = arith.mulf %37, %41 : vector<2x32xf32>
    %c2_17 = arith.constant 2 : index
    %c0_18 = arith.constant 0 : index
    %43 = vector.load %arg11[%c2_17, %c0_18] : memref<16x32xf32, #tpu.memory_space<vmem>>, vector<2x32xf32>
    tpu.vector_store %arg11[%c2_17, %c0_18], %42 {strides = array<i32>} : memref<16x32xf32, #tpu.memory_space<vmem>>, vector<2x32xf32>,
    %c4 = arith.constant 4 : index
    %c0_19 = arith.constant 0 : index
    %44 = vector.load %arg10[%c4, %c0_19] : memref<16x128xf32, #tpu.memory_space<vmem>>, vector<2x128xf32>
    %45 = arith.truncf %42 : vector<2x32xf32> to vector<2x32xbf16>
    %cst_20 = arith.constant dense<0.000000e+00> : vector<2x128xf32>
    %46 = tpu.matmul %45, %2, %cst_20 {dimension_numbers = #tpu.dot_dimension_numbers<[1], [0], [0], [1], [0, 0, 1, 1], [], []>} : vector<2x32xbf16>, vector<32x128xbf16>, vector<2x128xf32> -> vector<2x128xf32>
    %47 = arith.addf %44, %46 : vector<2x128xf32>
    %48 = vector.extract_strided_slice %47 {offsets = [0, 0], sizes = [2, 96], strides = [1, 1]} : vector<2x128xf32> to vector<2x96xf32>
    %49 = arith.negf %48 : vector<2x96xf32>
    %50 = math.exp %49 : vector<2x96xf32>
    %cst_21 = arith.constant 1.000000e+00 : f32
    %51 = vector.broadcast %cst_21 : f32 to vector<2x96xf32>
    %52 = arith.addf %51, %50 : vector<2x96xf32>
    %53 = arith.divf %51, %52 : vector<2x96xf32>
    %54 = vector.extract_strided_slice %47 {offsets = [0, 96], sizes = [2, 32], strides = [1, 1]} : vector<2x128xf32> to vector<2x32xf32>
    %55 = math.tanh %54 : vector<2x32xf32>
    %56 = vector.extract_strided_slice %53 {offsets = [0, 0], sizes = [2, 32], strides = [1, 1]} : vector<2x96xf32> to vector<2x32xf32>
    %57 = vector.extract_strided_slice %53 {offsets = [0, 32], sizes = [2, 32], strides = [1, 1]} : vector<2x96xf32> to vector<2x32xf32>
    %58 = vector.extract_strided_slice %53 {offsets = [0, 64], sizes = [2, 32], strides = [1, 1]} : vector<2x96xf32> to vector<2x32xf32>
    %59 = arith.mulf %57, %40 : vector<2x32xf32>
    %60 = arith.mulf %56, %55 : vector<2x32xf32>
    %61 = arith.addf %59, %60 : vector<2x32xf32>
    %62 = math.tanh %61 : vector<2x32xf32>
    %63 = arith.mulf %58, %62 : vector<2x32xf32>
    %c4_22 = arith.constant 4 : index
    %c0_23 = arith.constant 0 : index
    %64 = vector.load %arg11[%c4_22, %c0_23] : memref<16x32xf32, #tpu.memory_space<vmem>>, vector<2x32xf32>
    tpu.vector_store %arg11[%c4_22, %c0_23], %63 {strides = array<i32>} : memref<16x32xf32, #tpu.memory_space<vmem>>, vector<2x32xf32>,
    %c6 = arith.constant 6 : index
    %c0_24 = arith.constant 0 : index
    %65 = vector.load %arg10[%c6, %c0_24] : memref<16x128xf32, #tpu.memory_space<vmem>>, vector<2x128xf32>
    %66 = arith.truncf %63 : vector<2x32xf32> to vector<2x32xbf16>
    %cst_25 = arith.constant dense<0.000000e+00> : vector<2x128xf32>
    %67 = tpu.matmul %66, %2, %cst_25 {dimension_numbers = #tpu.dot_dimension_numbers<[1], [0], [0], [1], [0, 0, 1, 1], [], []>} : vector<2x32xbf16>, vector<32x128xbf16>, vector<2x128xf32> -> vector<2x128xf32>
    %68 = arith.addf %65, %67 : vector<2x128xf32>
    %69 = vector.extract_strided_slice %68 {offsets = [0, 0], sizes = [2, 96], strides = [1, 1]} : vector<2x128xf32> to vector<2x96xf32>
    %70 = arith.negf %69 : vector<2x96xf32>
    %71 = math.exp %70 : vector<2x96xf32>
    %cst_26 = arith.constant 1.000000e+00 : f32
    %72 = vector.broadcast %cst_26 : f32 to vector<2x96xf32>
    %73 = arith.addf %72, %71 : vector<2x96xf32>
    %74 = arith.divf %72, %73 : vector<2x96xf32>
    %75 = vector.extract_strided_slice %68 {offsets = [0, 96], sizes = [2, 32], strides = [1, 1]} : vector<2x128xf32> to vector<2x32xf32>
    %76 = math.tanh %75 : vector<2x32xf32>
    %77 = vector.extract_strided_slice %74 {offsets = [0, 0], sizes = [2, 32], strides = [1, 1]} : vector<2x96xf32> to vector<2x32xf32>
    %78 = vector.extract_strided_slice %74 {offsets = [0, 32], sizes = [2, 32], strides = [1, 1]} : vector<2x96xf32> to vector<2x32xf32>
    %79 = vector.extract_strided_slice %74 {offsets = [0, 64], sizes = [2, 32], strides = [1, 1]} : vector<2x96xf32> to vector<2x32xf32>
    %80 = arith.mulf %78, %61 : vector<2x32xf32>
    %81 = arith.mulf %77, %76 : vector<2x32xf32>
    %82 = arith.addf %80, %81 : vector<2x32xf32>
    %83 = math.tanh %82 : vector<2x32xf32>
    %84 = arith.mulf %79, %83 : vector<2x32xf32>
    %c6_27 = arith.constant 6 : index
    %c0_28 = arith.constant 0 : index
    %85 = vector.load %arg11[%c6_27, %c0_28] : memref<16x32xf32, #tpu.memory_space<vmem>>, vector<2x32xf32>
    tpu.vector_store %arg11[%c6_27, %c0_28], %84 {strides = array<i32>} : memref<16x32xf32, #tpu.memory_space<vmem>>, vector<2x32xf32>,
    %c8 = arith.constant 8 : index
    %c0_29 = arith.constant 0 : index
    %86 = vector.load %arg10[%c8, %c0_29] : memref<16x128xf32, #tpu.memory_space<vmem>>, vector<2x128xf32>
    %87 = arith.truncf %84 : vector<2x32xf32> to vector<2x32xbf16>
    %cst_30 = arith.constant dense<0.000000e+00> : vector<2x128xf32>
    %88 = tpu.matmul %87, %2, %cst_30 {dimension_numbers = #tpu.dot_dimension_numbers<[1], [0], [0], [1], [0, 0, 1, 1], [], []>} : vector<2x32xbf16>, vector<32x128xbf16>, vector<2x128xf32> -> vector<2x128xf32>
    %89 = arith.addf %86, %88 : vector<2x128xf32>
    %90 = vector.extract_strided_slice %89 {offsets = [0, 0], sizes = [2, 96], strides = [1, 1]} : vector<2x128xf32> to vector<2x96xf32>
    %91 = arith.negf %90 : vector<2x96xf32>
    %92 = math.exp %91 : vector<2x96xf32>
    %cst_31 = arith.constant 1.000000e+00 : f32
    %93 = vector.broadcast %cst_31 : f32 to vector<2x96xf32>
    %94 = arith.addf %93, %92 : vector<2x96xf32>
    %95 = arith.divf %93, %94 : vector<2x96xf32>
    %96 = vector.extract_strided_slice %89 {offsets = [0, 96], sizes = [2, 32], strides = [1, 1]} : vector<2x128xf32> to vector<2x32xf32>
    %97 = math.tanh %96 : vector<2x32xf32>
    %98 = vector.extract_strided_slice %95 {offsets = [0, 0], sizes = [2, 32], strides = [1, 1]} : vector<2x96xf32> to vector<2x32xf32>
    %99 = vector.extract_strided_slice %95 {offsets = [0, 32], sizes = [2, 32], strides = [1, 1]} : vector<2x96xf32> to vector<2x32xf32>
    %100 = vector.extract_strided_slice %95 {offsets = [0, 64], sizes = [2, 32], strides = [1, 1]} : vector<2x96xf32> to vector<2x32xf32>
    %101 = arith.mulf %99, %82 : vector<2x32xf32>
    %102 = arith.mulf %98, %97 : vector<2x32xf32>
    %103 = arith.addf %101, %102 : vector<2x32xf32>
    %104 = math.tanh %103 : vector<2x32xf32>
    %105 = arith.mulf %100, %104 : vector<2x32xf32>
    %c8_32 = arith.constant 8 : index
    %c0_33 = arith.constant 0 : index
    %106 = vector.load %arg11[%c8_32, %c0_33] : memref<16x32xf32, #tpu.memory_space<vmem>>, vector<2x32xf32>
    tpu.vector_store %arg11[%c8_32, %c0_33], %105 {strides = array<i32>} : memref<16x32xf32, #tpu.memory_space<vmem>>, vector<2x32xf32>,
    %c10 = arith.constant 10 : index
    %c0_34 = arith.constant 0 : index
    %107 = vector.load %arg10[%c10, %c0_34] : memref<16x128xf32, #tpu.memory_space<vmem>>, vector<2x128xf32>
    %108 = arith.truncf %105 : vector<2x32xf32> to vector<2x32xbf16>
    %cst_35 = arith.constant dense<0.000000e+00> : vector<2x128xf32>
    %109 = tpu.matmul %108, %2, %cst_35 {dimension_numbers = #tpu.dot_dimension_numbers<[1], [0], [0], [1], [0, 0, 1, 1], [], []>} : vector<2x32xbf16>, vector<32x128xbf16>, vector<2x128xf32> -> vector<2x128xf32>
    %110 = arith.addf %107, %109 : vector<2x128xf32>
    %111 = vector.extract_strided_slice %110 {offsets = [0, 0], sizes = [2, 96], strides = [1, 1]} : vector<2x128xf32> to vector<2x96xf32>
    %112 = arith.negf %111 : vector<2x96xf32>
    %113 = math.exp %112 : vector<2x96xf32>
    %cst_36 = arith.constant 1.000000e+00 : f32
    %114 = vector.broadcast %cst_36 : f32 to vector<2x96xf32>
    %115 = arith.addf %114, %113 : vector<2x96xf32>
    %116 = arith.divf %114, %115 : vector<2x96xf32>
    %117 = vector.extract_strided_slice %110 {offsets = [0, 96], sizes = [2, 32], strides = [1, 1]} : vector<2x128xf32> to vector<2x32xf32>
    %118 = math.tanh %117 : vector<2x32xf32>
    %119 = vector.extract_strided_slice %116 {offsets = [0, 0], sizes = [2, 32], strides = [1, 1]} : vector<2x96xf32> to vector<2x32xf32>
    %120 = vector.extract_strided_slice %116 {offsets = [0, 32], sizes = [2, 32], strides = [1, 1]} : vector<2x96xf32> to vector<2x32xf32>
    %121 = vector.extract_strided_slice %116 {offsets = [0, 64], sizes = [2, 32], strides = [1, 1]} : vector<2x96xf32> to vector<2x32xf32>
    %122 = arith.mulf %120, %103 : vector<2x32xf32>
    %123 = arith.mulf %119, %118 : vector<2x32xf32>
    %124 = arith.addf %122, %123 : vector<2x32xf32>
    %125 = math.tanh %124 : vector<2x32xf32>
    %126 = arith.mulf %121, %125 : vector<2x32xf32>
    %c10_37 = arith.constant 10 : index
    %c0_38 = arith.constant 0 : index
    %127 = vector.load %arg11[%c10_37, %c0_38] : memref<16x32xf32, #tpu.memory_space<vmem>>, vector<2x32xf32>
    tpu.vector_store %arg11[%c10_37, %c0_38], %126 {strides = array<i32>} : memref<16x32xf32, #tpu.memory_space<vmem>>, vector<2x32xf32>,
    %c12 = arith.constant 12 : index
    %c0_39 = arith.constant 0 : index
    %128 = vector.load %arg10[%c12, %c0_39] : memref<16x128xf32, #tpu.memory_space<vmem>>, vector<2x128xf32>
    %129 = arith.truncf %126 : vector<2x32xf32> to vector<2x32xbf16>
    %cst_40 = arith.constant dense<0.000000e+00> : vector<2x128xf32>
    %130 = tpu.matmul %129, %2, %cst_40 {dimension_numbers = #tpu.dot_dimension_numbers<[1], [0], [0], [1], [0, 0, 1, 1], [], []>} : vector<2x32xbf16>, vector<32x128xbf16>, vector<2x128xf32> -> vector<2x128xf32>
    %131 = arith.addf %128, %130 : vector<2x128xf32>
    %132 = vector.extract_strided_slice %131 {offsets = [0, 0], sizes = [2, 96], strides = [1, 1]} : vector<2x128xf32> to vector<2x96xf32>
    %133 = arith.negf %132 : vector<2x96xf32>
    %134 = math.exp %133 : vector<2x96xf32>
    %cst_41 = arith.constant 1.000000e+00 : f32
    %135 = vector.broadcast %cst_41 : f32 to vector<2x96xf32>
    %136 = arith.addf %135, %134 : vector<2x96xf32>
    %137 = arith.divf %135, %136 : vector<2x96xf32>
    %138 = vector.extract_strided_slice %131 {offsets = [0, 96], sizes = [2, 32], strides = [1, 1]} : vector<2x128xf32> to vector<2x32xf32>
    %139 = math.tanh %138 : vector<2x32xf32>
    %140 = vector.extract_strided_slice %137 {offsets = [0, 0], sizes = [2, 32], strides = [1, 1]} : vector<2x96xf32> to vector<2x32xf32>
    %141 = vector.extract_strided_slice %137 {offsets = [0, 32], sizes = [2, 32], strides = [1, 1]} : vector<2x96xf32> to vector<2x32xf32>
    %142 = vector.extract_strided_slice %137 {offsets = [0, 64], sizes = [2, 32], strides = [1, 1]} : vector<2x96xf32> to vector<2x32xf32>
    %143 = arith.mulf %141, %124 : vector<2x32xf32>
    %144 = arith.mulf %140, %139 : vector<2x32xf32>
    %145 = arith.addf %143, %144 : vector<2x32xf32>
    %146 = math.tanh %145 : vector<2x32xf32>
    %147 = arith.mulf %142, %146 : vector<2x32xf32>
    %c12_42 = arith.constant 12 : index
    %c0_43 = arith.constant 0 : index
    %148 = vector.load %arg11[%c12_42, %c0_43] : memref<16x32xf32, #tpu.memory_space<vmem>>, vector<2x32xf32>
    tpu.vector_store %arg11[%c12_42, %c0_43], %147 {strides = array<i32>} : memref<16x32xf32, #tpu.memory_space<vmem>>, vector<2x32xf32>,
    %c14 = arith.constant 14 : index
    %c0_44 = arith.constant 0 : index
    %149 = vector.load %arg10[%c14, %c0_44] : memref<16x128xf32, #tpu.memory_space<vmem>>, vector<2x128xf32>
    %150 = arith.truncf %147 : vector<2x32xf32> to vector<2x32xbf16>
    %cst_45 = arith.constant dense<0.000000e+00> : vector<2x128xf32>
    %151 = tpu.matmul %150, %2, %cst_45 {dimension_numbers = #tpu.dot_dimension_numbers<[1], [0], [0], [1], [0, 0, 1, 1], [], []>} : vector<2x32xbf16>, vector<32x128xbf16>, vector<2x128xf32> -> vector<2x128xf32>
    %152 = arith.addf %149, %151 : vector<2x128xf32>
    %153 = vector.extract_strided_slice %152 {offsets = [0, 0], sizes = [2, 96], strides = [1, 1]} : vector<2x128xf32> to vector<2x96xf32>
    %154 = arith.negf %153 : vector<2x96xf32>
    %155 = math.exp %154 : vector<2x96xf32>
    %cst_46 = arith.constant 1.000000e+00 : f32
    %156 = vector.broadcast %cst_46 : f32 to vector<2x96xf32>
    %157 = arith.addf %156, %155 : vector<2x96xf32>
    %158 = arith.divf %156, %157 : vector<2x96xf32>
    %159 = vector.extract_strided_slice %152 {offsets = [0, 96], sizes = [2, 32], strides = [1, 1]} : vector<2x128xf32> to vector<2x32xf32>
    %160 = math.tanh %159 : vector<2x32xf32>
    %161 = vector.extract_strided_slice %158 {offsets = [0, 0], sizes = [2, 32], strides = [1, 1]} : vector<2x96xf32> to vector<2x32xf32>
    %162 = vector.extract_strided_slice %158 {offsets = [0, 32], sizes = [2, 32], strides = [1, 1]} : vector<2x96xf32> to vector<2x32xf32>
    %163 = vector.extract_strided_slice %158 {offsets = [0, 64], sizes = [2, 32], strides = [1, 1]} : vector<2x96xf32> to vector<2x32xf32>
    %164 = arith.mulf %162, %145 : vector<2x32xf32>
    %165 = arith.mulf %161, %160 : vector<2x32xf32>
    %166 = arith.addf %164, %165 : vector<2x32xf32>
    %167 = math.tanh %166 : vector<2x32xf32>
    %168 = arith.mulf %163, %167 : vector<2x32xf32>
    %c14_47 = arith.constant 14 : index
    %c0_48 = arith.constant 0 : index
    %169 = vector.load %arg11[%c14_47, %c0_48] : memref<16x32xf32, #tpu.memory_space<vmem>>, vector<2x32xf32>
    tpu.vector_store %arg11[%c14_47, %c0_48], %168 {strides = array<i32>} : memref<16x32xf32, #tpu.memory_space<vmem>>, vector<2x32xf32>,
    %c0_49 = arith.constant 0 : index
    %c0_50 = arith.constant 0 : index
    %170 = vector.load %arg11[%c0_49, %c0_50] : memref<16x32xf32, #tpu.memory_space<vmem>>, vector<16x32xf32>
    %171 = arith.truncf %170 : vector<16x32xf32> to vector<16x32xbf16>
    %c0_51 = arith.constant 0 : index
    %c0_52 = arith.constant 0 : index
    %172 = vector.load %arg4[%c0_51, %c0_52] : memref<32x128xbf16, #tpu.memory_space<vmem>>, vector<32x128xbf16>
    %c0_53 = arith.constant 0 : index
    %c0_54 = arith.constant 0 : index
    %173 = vector.load %arg5[%c0_53, %c0_54] : memref<32x128xbf16, #tpu.memory_space<vmem>>, vector<32x128xbf16>
    %c0_55 = arith.constant 0 : index
    %c0_56 = arith.constant 0 : index
    %174 = vector.load %arg6[%c0_55, %c0_56] : memref<1x128xf32, #tpu.memory_space<vmem>>, vector<1x128xf32>
    %cst_57 = arith.constant dense<0.000000e+00> : vector<16x128xf32>
    %175 = tpu.matmul %171, %172, %cst_57 {dimension_numbers = #tpu.dot_dimension_numbers<[1], [0], [0], [1], [0, 0, 1, 1], [], []>} : vector<16x32xbf16>, vector<32x128xbf16>, vector<16x128xf32> -> vector<16x128xf32>
    %176 = vector.broadcast %174 : vector<1x128xf32> to vector<16x128xf32>
    %177 = arith.addf %175, %176 : vector<16x128xf32>
    %c0_58 = arith.constant 0 : index
    %c0_59 = arith.constant 0 : index
    %178 = vector.load %arg10[%c0_58, %c0_59] : memref<16x128xf32, #tpu.memory_space<vmem>>, vector<16x128xf32>
    tpu.vector_store %arg10[%c0_58, %c0_59], %177 {strides = array<i32>} : memref<16x128xf32, #tpu.memory_space<vmem>>, vector<16x128xf32>,
    %c0_60 = arith.constant 0 : index
    %c0_61 = arith.constant 0 : index
    %179 = vector.load %arg10[%c0_60, %c0_61] : memref<16x128xf32, #tpu.memory_space<vmem>>, vector<2x128xf32>
    %180 = vector.extract_strided_slice %179 {offsets = [0, 0], sizes = [2, 96], strides = [1, 1]} : vector<2x128xf32> to vector<2x96xf32>
    %181 = arith.negf %180 : vector<2x96xf32>
    %182 = math.exp %181 : vector<2x96xf32>
    %cst_62 = arith.constant 1.000000e+00 : f32
    %183 = vector.broadcast %cst_62 : f32 to vector<2x96xf32>
    %184 = arith.addf %183, %182 : vector<2x96xf32>
    %185 = arith.divf %183, %184 : vector<2x96xf32>
    %186 = vector.extract_strided_slice %179 {offsets = [0, 96], sizes = [2, 32], strides = [1, 1]} : vector<2x128xf32> to vector<2x32xf32>
    %187 = math.tanh %186 : vector<2x32xf32>
    %188 = vector.extract_strided_slice %185 {offsets = [0, 0], sizes = [2, 32], strides = [1, 1]} : vector<2x96xf32> to vector<2x32xf32>
    %189 = vector.extract_strided_slice %185 {offsets = [0, 64], sizes = [2, 32], strides = [1, 1]} : vector<2x96xf32> to vector<2x32xf32>
    %190 = arith.mulf %188, %187 : vector<2x32xf32>
    %191 = math.tanh %190 : vector<2x32xf32>
    %192 = arith.mulf %189, %191 : vector<2x32xf32>
    %c0_63 = arith.constant 0 : index
    %c0_64 = arith.constant 0 : index
    %193 = vector.load %arg11[%c0_63, %c0_64] : memref<16x32xf32, #tpu.memory_space<vmem>>, vector<2x32xf32>
    tpu.vector_store %arg11[%c0_63, %c0_64], %192 {strides = array<i32>} : memref<16x32xf32, #tpu.memory_space<vmem>>, vector<2x32xf32>,
    %c2_65 = arith.constant 2 : index
    %c0_66 = arith.constant 0 : index
    %194 = vector.load %arg10[%c2_65, %c0_66] : memref<16x128xf32, #tpu.memory_space<vmem>>, vector<2x128xf32>
    %195 = arith.truncf %192 : vector<2x32xf32> to vector<2x32xbf16>
    %cst_67 = arith.constant dense<0.000000e+00> : vector<2x128xf32>
    %196 = tpu.matmul %195, %173, %cst_67 {dimension_numbers = #tpu.dot_dimension_numbers<[1], [0], [0], [1], [0, 0, 1, 1], [], []>} : vector<2x32xbf16>, vector<32x128xbf16>, vector<2x128xf32> -> vector<2x128xf32>
    %197 = arith.addf %194, %196 : vector<2x128xf32>
    %198 = vector.extract_strided_slice %197 {offsets = [0, 0], sizes = [2, 96], strides = [1, 1]} : vector<2x128xf32> to vector<2x96xf32>
    %199 = arith.negf %198 : vector<2x96xf32>
    %200 = math.exp %199 : vector<2x96xf32>
    %cst_68 = arith.constant 1.000000e+00 : f32
    %201 = vector.broadcast %cst_68 : f32 to vector<2x96xf32>
    %202 = arith.addf %201, %200 : vector<2x96xf32>
    %203 = arith.divf %201, %202 : vector<2x96xf32>
    %204 = vector.extract_strided_slice %197 {offsets = [0, 96], sizes = [2, 32], strides = [1, 1]} : vector<2x128xf32> to vector<2x32xf32>
    %205 = math.tanh %204 : vector<2x32xf32>
    %206 = vector.extract_strided_slice %203 {offsets = [0, 0], sizes = [2, 32], strides = [1, 1]} : vector<2x96xf32> to vector<2x32xf32>
    %207 = vector.extract_strided_slice %203 {offsets = [0, 32], sizes = [2, 32], strides = [1, 1]} : vector<2x96xf32> to vector<2x32xf32>
    %208 = vector.extract_strided_slice %203 {offsets = [0, 64], sizes = [2, 32], strides = [1, 1]} : vector<2x96xf32> to vector<2x32xf32>
    %209 = arith.mulf %207, %190 : vector<2x32xf32>
    %210 = arith.mulf %206, %205 : vector<2x32xf32>
    %211 = arith.addf %209, %210 : vector<2x32xf32>
    %212 = math.tanh %211 : vector<2x32xf32>
    %213 = arith.mulf %208, %212 : vector<2x32xf32>
    %c2_69 = arith.constant 2 : index
    %c0_70 = arith.constant 0 : index
    %214 = vector.load %arg11[%c2_69, %c0_70] : memref<16x32xf32, #tpu.memory_space<vmem>>, vector<2x32xf32>
    tpu.vector_store %arg11[%c2_69, %c0_70], %213 {strides = array<i32>} : memref<16x32xf32, #tpu.memory_space<vmem>>, vector<2x32xf32>,
    %c4_71 = arith.constant 4 : index
    %c0_72 = arith.constant 0 : index
    %215 = vector.load %arg10[%c4_71, %c0_72] : memref<16x128xf32, #tpu.memory_space<vmem>>, vector<2x128xf32>
    %216 = arith.truncf %213 : vector<2x32xf32> to vector<2x32xbf16>
    %cst_73 = arith.constant dense<0.000000e+00> : vector<2x128xf32>
    %217 = tpu.matmul %216, %173, %cst_73 {dimension_numbers = #tpu.dot_dimension_numbers<[1], [0], [0], [1], [0, 0, 1, 1], [], []>} : vector<2x32xbf16>, vector<32x128xbf16>, vector<2x128xf32> -> vector<2x128xf32>
    %218 = arith.addf %215, %217 : vector<2x128xf32>
    %219 = vector.extract_strided_slice %218 {offsets = [0, 0], sizes = [2, 96], strides = [1, 1]} : vector<2x128xf32> to vector<2x96xf32>
    %220 = arith.negf %219 : vector<2x96xf32>
    %221 = math.exp %220 : vector<2x96xf32>
    %cst_74 = arith.constant 1.000000e+00 : f32
    %222 = vector.broadcast %cst_74 : f32 to vector<2x96xf32>
    %223 = arith.addf %222, %221 : vector<2x96xf32>
    %224 = arith.divf %222, %223 : vector<2x96xf32>
    %225 = vector.extract_strided_slice %218 {offsets = [0, 96], sizes = [2, 32], strides = [1, 1]} : vector<2x128xf32> to vector<2x32xf32>
    %226 = math.tanh %225 : vector<2x32xf32>
    %227 = vector.extract_strided_slice %224 {offsets = [0, 0], sizes = [2, 32], strides = [1, 1]} : vector<2x96xf32> to vector<2x32xf32>
    %228 = vector.extract_strided_slice %224 {offsets = [0, 32], sizes = [2, 32], strides = [1, 1]} : vector<2x96xf32> to vector<2x32xf32>
    %229 = vector.extract_strided_slice %224 {offsets = [0, 64], sizes = [2, 32], strides = [1, 1]} : vector<2x96xf32> to vector<2x32xf32>
    %230 = arith.mulf %228, %211 : vector<2x32xf32>
    %231 = arith.mulf %227, %226 : vector<2x32xf32>
    %232 = arith.addf %230, %231 : vector<2x32xf32>
    %233 = math.tanh %232 : vector<2x32xf32>
    %234 = arith.mulf %229, %233 : vector<2x32xf32>
    %c4_75 = arith.constant 4 : index
    %c0_76 = arith.constant 0 : index
    %235 = vector.load %arg11[%c4_75, %c0_76] : memref<16x32xf32, #tpu.memory_space<vmem>>, vector<2x32xf32>
    tpu.vector_store %arg11[%c4_75, %c0_76], %234 {strides = array<i32>} : memref<16x32xf32, #tpu.memory_space<vmem>>, vector<2x32xf32>,
    %c6_77 = arith.constant 6 : index
    %c0_78 = arith.constant 0 : index
    %236 = vector.load %arg10[%c6_77, %c0_78] : memref<16x128xf32, #tpu.memory_space<vmem>>, vector<2x128xf32>
    %237 = arith.truncf %234 : vector<2x32xf32> to vector<2x32xbf16>
    %cst_79 = arith.constant dense<0.000000e+00> : vector<2x128xf32>
    %238 = tpu.matmul %237, %173, %cst_79 {dimension_numbers = #tpu.dot_dimension_numbers<[1], [0], [0], [1], [0, 0, 1, 1], [], []>} : vector<2x32xbf16>, vector<32x128xbf16>, vector<2x128xf32> -> vector<2x128xf32>
    %239 = arith.addf %236, %238 : vector<2x128xf32>
    %240 = vector.extract_strided_slice %239 {offsets = [0, 0], sizes = [2, 96], strides = [1, 1]} : vector<2x128xf32> to vector<2x96xf32>
    %241 = arith.negf %240 : vector<2x96xf32>
    %242 = math.exp %241 : vector<2x96xf32>
    %cst_80 = arith.constant 1.000000e+00 : f32
    %243 = vector.broadcast %cst_80 : f32 to vector<2x96xf32>
    %244 = arith.addf %243, %242 : vector<2x96xf32>
    %245 = arith.divf %243, %244 : vector<2x96xf32>
    %246 = vector.extract_strided_slice %239 {offsets = [0, 96], sizes = [2, 32], strides = [1, 1]} : vector<2x128xf32> to vector<2x32xf32>
    %247 = math.tanh %246 : vector<2x32xf32>
    %248 = vector.extract_strided_slice %245 {offsets = [0, 0], sizes = [2, 32], strides = [1, 1]} : vector<2x96xf32> to vector<2x32xf32>
    %249 = vector.extract_strided_slice %245 {offsets = [0, 32], sizes = [2, 32], strides = [1, 1]} : vector<2x96xf32> to vector<2x32xf32>
    %250 = vector.extract_strided_slice %245 {offsets = [0, 64], sizes = [2, 32], strides = [1, 1]} : vector<2x96xf32> to vector<2x32xf32>
    %251 = arith.mulf %249, %232 : vector<2x32xf32>
    %252 = arith.mulf %248, %247 : vector<2x32xf32>
    %253 = arith.addf %251, %252 : vector<2x32xf32>
    %254 = math.tanh %253 : vector<2x32xf32>
    %255 = arith.mulf %250, %254 : vector<2x32xf32>
    %c6_81 = arith.constant 6 : index
    %c0_82 = arith.constant 0 : index
    %256 = vector.load %arg11[%c6_81, %c0_82] : memref<16x32xf32, #tpu.memory_space<vmem>>, vector<2x32xf32>
    tpu.vector_store %arg11[%c6_81, %c0_82], %255 {strides = array<i32>} : memref<16x32xf32, #tpu.memory_space<vmem>>, vector<2x32xf32>,
    %c8_83 = arith.constant 8 : index
    %c0_84 = arith.constant 0 : index
    %257 = vector.load %arg10[%c8_83, %c0_84] : memref<16x128xf32, #tpu.memory_space<vmem>>, vector<2x128xf32>
    %258 = arith.truncf %255 : vector<2x32xf32> to vector<2x32xbf16>
    %cst_85 = arith.constant dense<0.000000e+00> : vector<2x128xf32>
    %259 = tpu.matmul %258, %173, %cst_85 {dimension_numbers = #tpu.dot_dimension_numbers<[1], [0], [0], [1], [0, 0, 1, 1], [], []>} : vector<2x32xbf16>, vector<32x128xbf16>, vector<2x128xf32> -> vector<2x128xf32>
    %260 = arith.addf %257, %259 : vector<2x128xf32>
    %261 = vector.extract_strided_slice %260 {offsets = [0, 0], sizes = [2, 96], strides = [1, 1]} : vector<2x128xf32> to vector<2x96xf32>
    %262 = arith.negf %261 : vector<2x96xf32>
    %263 = math.exp %262 : vector<2x96xf32>
    %cst_86 = arith.constant 1.000000e+00 : f32
    %264 = vector.broadcast %cst_86 : f32 to vector<2x96xf32>
    %265 = arith.addf %264, %263 : vector<2x96xf32>
    %266 = arith.divf %264, %265 : vector<2x96xf32>
    %267 = vector.extract_strided_slice %260 {offsets = [0, 96], sizes = [2, 32], strides = [1, 1]} : vector<2x128xf32> to vector<2x32xf32>
    %268 = math.tanh %267 : vector<2x32xf32>
    %269 = vector.extract_strided_slice %266 {offsets = [0, 0], sizes = [2, 32], strides = [1, 1]} : vector<2x96xf32> to vector<2x32xf32>
    %270 = vector.extract_strided_slice %266 {offsets = [0, 32], sizes = [2, 32], strides = [1, 1]} : vector<2x96xf32> to vector<2x32xf32>
    %271 = vector.extract_strided_slice %266 {offsets = [0, 64], sizes = [2, 32], strides = [1, 1]} : vector<2x96xf32> to vector<2x32xf32>
    %272 = arith.mulf %270, %253 : vector<2x32xf32>
    %273 = arith.mulf %269, %268 : vector<2x32xf32>
    %274 = arith.addf %272, %273 : vector<2x32xf32>
    %275 = math.tanh %274 : vector<2x32xf32>
    %276 = arith.mulf %271, %275 : vector<2x32xf32>
    %c8_87 = arith.constant 8 : index
    %c0_88 = arith.constant 0 : index
    %277 = vector.load %arg11[%c8_87, %c0_88] : memref<16x32xf32, #tpu.memory_space<vmem>>, vector<2x32xf32>
    tpu.vector_store %arg11[%c8_87, %c0_88], %276 {strides = array<i32>} : memref<16x32xf32, #tpu.memory_space<vmem>>, vector<2x32xf32>,
    %c10_89 = arith.constant 10 : index
    %c0_90 = arith.constant 0 : index
    %278 = vector.load %arg10[%c10_89, %c0_90] : memref<16x128xf32, #tpu.memory_space<vmem>>, vector<2x128xf32>
    %279 = arith.truncf %276 : vector<2x32xf32> to vector<2x32xbf16>
    %cst_91 = arith.constant dense<0.000000e+00> : vector<2x128xf32>
    %280 = tpu.matmul %279, %173, %cst_91 {dimension_numbers = #tpu.dot_dimension_numbers<[1], [0], [0], [1], [0, 0, 1, 1], [], []>} : vector<2x32xbf16>, vector<32x128xbf16>, vector<2x128xf32> -> vector<2x128xf32>
    %281 = arith.addf %278, %280 : vector<2x128xf32>
    %282 = vector.extract_strided_slice %281 {offsets = [0, 0], sizes = [2, 96], strides = [1, 1]} : vector<2x128xf32> to vector<2x96xf32>
    %283 = arith.negf %282 : vector<2x96xf32>
    %284 = math.exp %283 : vector<2x96xf32>
    %cst_92 = arith.constant 1.000000e+00 : f32
    %285 = vector.broadcast %cst_92 : f32 to vector<2x96xf32>
    %286 = arith.addf %285, %284 : vector<2x96xf32>
    %287 = arith.divf %285, %286 : vector<2x96xf32>
    %288 = vector.extract_strided_slice %281 {offsets = [0, 96], sizes = [2, 32], strides = [1, 1]} : vector<2x128xf32> to vector<2x32xf32>
    %289 = math.tanh %288 : vector<2x32xf32>
    %290 = vector.extract_strided_slice %287 {offsets = [0, 0], sizes = [2, 32], strides = [1, 1]} : vector<2x96xf32> to vector<2x32xf32>
    %291 = vector.extract_strided_slice %287 {offsets = [0, 32], sizes = [2, 32], strides = [1, 1]} : vector<2x96xf32> to vector<2x32xf32>
    %292 = vector.extract_strided_slice %287 {offsets = [0, 64], sizes = [2, 32], strides = [1, 1]} : vector<2x96xf32> to vector<2x32xf32>
    %293 = arith.mulf %291, %274 : vector<2x32xf32>
    %294 = arith.mulf %290, %289 : vector<2x32xf32>
    %295 = arith.addf %293, %294 : vector<2x32xf32>
    %296 = math.tanh %295 : vector<2x32xf32>
    %297 = arith.mulf %292, %296 : vector<2x32xf32>
    %c10_93 = arith.constant 10 : index
    %c0_94 = arith.constant 0 : index
    %298 = vector.load %arg11[%c10_93, %c0_94] : memref<16x32xf32, #tpu.memory_space<vmem>>, vector<2x32xf32>
    tpu.vector_store %arg11[%c10_93, %c0_94], %297 {strides = array<i32>} : memref<16x32xf32, #tpu.memory_space<vmem>>, vector<2x32xf32>,
    %c12_95 = arith.constant 12 : index
    %c0_96 = arith.constant 0 : index
    %299 = vector.load %arg10[%c12_95, %c0_96] : memref<16x128xf32, #tpu.memory_space<vmem>>, vector<2x128xf32>
    %300 = arith.truncf %297 : vector<2x32xf32> to vector<2x32xbf16>
    %cst_97 = arith.constant dense<0.000000e+00> : vector<2x128xf32>
    %301 = tpu.matmul %300, %173, %cst_97 {dimension_numbers = #tpu.dot_dimension_numbers<[1], [0], [0], [1], [0, 0, 1, 1], [], []>} : vector<2x32xbf16>, vector<32x128xbf16>, vector<2x128xf32> -> vector<2x128xf32>
    %302 = arith.addf %299, %301 : vector<2x128xf32>
    %303 = vector.extract_strided_slice %302 {offsets = [0, 0], sizes = [2, 96], strides = [1, 1]} : vector<2x128xf32> to vector<2x96xf32>
    %304 = arith.negf %303 : vector<2x96xf32>
    %305 = math.exp %304 : vector<2x96xf32>
    %cst_98 = arith.constant 1.000000e+00 : f32
    %306 = vector.broadcast %cst_98 : f32 to vector<2x96xf32>
    %307 = arith.addf %306, %305 : vector<2x96xf32>
    %308 = arith.divf %306, %307 : vector<2x96xf32>
    %309 = vector.extract_strided_slice %302 {offsets = [0, 96], sizes = [2, 32], strides = [1, 1]} : vector<2x128xf32> to vector<2x32xf32>
    %310 = math.tanh %309 : vector<2x32xf32>
    %311 = vector.extract_strided_slice %308 {offsets = [0, 0], sizes = [2, 32], strides = [1, 1]} : vector<2x96xf32> to vector<2x32xf32>
    %312 = vector.extract_strided_slice %308 {offsets = [0, 32], sizes = [2, 32], strides = [1, 1]} : vector<2x96xf32> to vector<2x32xf32>
    %313 = vector.extract_strided_slice %308 {offsets = [0, 64], sizes = [2, 32], strides = [1, 1]} : vector<2x96xf32> to vector<2x32xf32>
    %314 = arith.mulf %312, %295 : vector<2x32xf32>
    %315 = arith.mulf %311, %310 : vector<2x32xf32>
    %316 = arith.addf %314, %315 : vector<2x32xf32>
    %317 = math.tanh %316 : vector<2x32xf32>
    %318 = arith.mulf %313, %317 : vector<2x32xf32>
    %c12_99 = arith.constant 12 : index
    %c0_100 = arith.constant 0 : index
    %319 = vector.load %arg11[%c12_99, %c0_100] : memref<16x32xf32, #tpu.memory_space<vmem>>, vector<2x32xf32>
    tpu.vector_store %arg11[%c12_99, %c0_100], %318 {strides = array<i32>} : memref<16x32xf32, #tpu.memory_space<vmem>>, vector<2x32xf32>,
    %c14_101 = arith.constant 14 : index
    %c0_102 = arith.constant 0 : index
    %320 = vector.load %arg10[%c14_101, %c0_102] : memref<16x128xf32, #tpu.memory_space<vmem>>, vector<2x128xf32>
    %321 = arith.truncf %318 : vector<2x32xf32> to vector<2x32xbf16>
    %cst_103 = arith.constant dense<0.000000e+00> : vector<2x128xf32>
    %322 = tpu.matmul %321, %173, %cst_103 {dimension_numbers = #tpu.dot_dimension_numbers<[1], [0], [0], [1], [0, 0, 1, 1], [], []>} : vector<2x32xbf16>, vector<32x128xbf16>, vector<2x128xf32> -> vector<2x128xf32>
    %323 = arith.addf %320, %322 : vector<2x128xf32>
    %324 = vector.extract_strided_slice %323 {offsets = [0, 0], sizes = [2, 96], strides = [1, 1]} : vector<2x128xf32> to vector<2x96xf32>
    %325 = arith.negf %324 : vector<2x96xf32>
    %326 = math.exp %325 : vector<2x96xf32>
    %cst_104 = arith.constant 1.000000e+00 : f32
    %327 = vector.broadcast %cst_104 : f32 to vector<2x96xf32>
    %328 = arith.addf %327, %326 : vector<2x96xf32>
    %329 = arith.divf %327, %328 : vector<2x96xf32>
    %330 = vector.extract_strided_slice %323 {offsets = [0, 96], sizes = [2, 32], strides = [1, 1]} : vector<2x128xf32> to vector<2x32xf32>
    %331 = math.tanh %330 : vector<2x32xf32>
    %332 = vector.extract_strided_slice %329 {offsets = [0, 0], sizes = [2, 32], strides = [1, 1]} : vector<2x96xf32> to vector<2x32xf32>
    %333 = vector.extract_strided_slice %329 {offsets = [0, 32], sizes = [2, 32], strides = [1, 1]} : vector<2x96xf32> to vector<2x32xf32>
    %334 = vector.extract_strided_slice %329 {offsets = [0, 64], sizes = [2, 32], strides = [1, 1]} : vector<2x96xf32> to vector<2x32xf32>
    %335 = arith.mulf %333, %316 : vector<2x32xf32>
    %336 = arith.mulf %332, %331 : vector<2x32xf32>
    %337 = arith.addf %335, %336 : vector<2x32xf32>
    %338 = math.tanh %337 : vector<2x32xf32>
    %339 = arith.mulf %334, %338 : vector<2x32xf32>
    %c14_105 = arith.constant 14 : index
    %c0_106 = arith.constant 0 : index
    %340 = vector.load %arg11[%c14_105, %c0_106] : memref<16x32xf32, #tpu.memory_space<vmem>>, vector<2x32xf32>
    tpu.vector_store %arg11[%c14_105, %c0_106], %339 {strides = array<i32>} : memref<16x32xf32, #tpu.memory_space<vmem>>, vector<2x32xf32>,
    %c0_107 = arith.constant 0 : index
    %c0_108 = arith.constant 0 : index
    %341 = vector.load %arg11[%c0_107, %c0_108] : memref<16x32xf32, #tpu.memory_space<vmem>>, vector<16x32xf32>
    %342 = arith.truncf %341 : vector<16x32xf32> to vector<16x32xbf16>
    %c0_109 = arith.constant 0 : index
    %c0_110 = arith.constant 0 : index
    %343 = vector.load %arg7[%c0_109, %c0_110] : memref<32x128xbf16, #tpu.memory_space<vmem>>, vector<32x128xbf16>
    %cst_111 = arith.constant dense<0.000000e+00> : vector<16x128xf32>
    %344 = tpu.matmul %342, %343, %cst_111 {dimension_numbers = #tpu.dot_dimension_numbers<[1], [0], [0], [1], [0, 0, 1, 1], [], []>} : vector<16x32xbf16>, vector<32x128xbf16>, vector<16x128xf32> -> vector<16x128xf32>
    %c0_112 = arith.constant 0 : index
    %c0_113 = arith.constant 0 : index
    %345 = vector.load %arg8[%c0_112, %c0_113] : memref<1x128xf32, #tpu.memory_space<vmem>>, vector<1x128xf32>
    %346 = vector.broadcast %345 : vector<1x128xf32> to vector<16x128xf32>
    %347 = arith.addf %344, %346 : vector<16x128xf32>
    %c0_114 = arith.constant 0 : index
    %c0_115 = arith.constant 0 : index
    %348 = vector.load %arg9[%c0_114, %c0_115] : memref<16x128xf32, #tpu.memory_space<vmem>>, vector<16x128xf32>
    tpu.vector_store %arg9[%c0_114, %c0_115], %347 {strides = array<i32>} : memref<16x128xf32, #tpu.memory_space<vmem>>, vector<16x128xf32>,
    return
  }
}

</mosaic_0001>

<llo_original>
// kernel: tpu_custom_call.1
$region0: #{tpu_custom_call.1}
  #allocation0 [shape = 'u32[]', space=smem, size = 0x4, offset = 0x4, fixed_abs, tag = 'smem constant byte address 0x4 - core index']
  #allocation1 [shape = 'u32[144,128]{1,0:T(1,128)}', space=vmem, size = 0x12000, scoped, tag = 'internal scratch']
  #allocation2 [shape = 'f32[16,128]{1,0:T(8,128)}', space=vmem, size = 0x2000, scoped, tag = 'scratch operand']
  #allocation3 [shape = 'f32[16,32]{1,0:T(8,128)}', space=vmem, size = 0x2000, scoped, tag = 'scratch operand']
  %s0 = inlined_call_operand.vmem [shape: bf16[16,4], index: 0, kind: input, shape index: {}]
  %s1 = inlined_call_operand.hbm [shape: bf16[4,128], index: 1, kind: input, shape index: {}]
  %s2 = inlined_call_operand.vmem [shape: bf16[32,128], index: 2, kind: input, shape index: {}]
  %s3 = inlined_call_operand.hbm [shape: f32[1,128], index: 3, kind: input, shape index: {}]
  %s4 = inlined_call_operand.hbm [shape: bf16[32,128], index: 4, kind: input, shape index: {}]
  %s5 = inlined_call_operand.hbm [shape: bf16[32,128], index: 5, kind: input, shape index: {}]
  %s6 = inlined_call_operand.hbm [shape: f32[1,128], index: 6, kind: input, shape index: {}]
  %s7 = inlined_call_operand.vmem [shape: bf16[32,128], index: 7, kind: input, shape index: {}]
  %s8 = inlined_call_operand.vmem [shape: f32[1,128], index: 8, kind: input, shape index: {}]
  %s9 = inlined_call_operand.hbm [shape: f32[16,128], index: 9, kind: output, shape index: {}]
  %s10 = sld [smem:[#allocation0]]
  $region66: #{tpu_custom_call.1} parent=0
    _
  %s12 = ssub.s32 1, %s10
  %s13 = scalar_select 0, %s12, %s10
  $region1: #{tpu_custom_call.1} parent=0
    #allocation4 [shape = 'u8[1024]{0}', space=vmem, size = 0x400, scoped, tag = 'input window, operand 1, single buffered']
    #allocation5 [shape = 's32[1]{0}', space=sflag, size = 0x4, scoped, tag = 'scoped memory for tpu_custom_call.1']
    #allocation6 [shape = 's32[1]{0}', space=sflag, size = 0x4, scoped, tag = 'scoped memory for tpu_custom_call.1']
    #allocation7 [shape = 'u8[512]{0}', space=vmem, size = 0x400, scoped, tag = 'input window, operand 3, single buffered']
    #allocation8 [shape = 's32[1]{0}', space=sflag, size = 0x4, scoped, tag = 'scoped memory for tpu_custom_call.1']
    #allocation9 [shape = 'u8[8192]{0}', space=vmem, size = 0x2000, scoped, tag = 'input window, operand 4, single buffered']
    #allocation10 [shape = 'u8[8192]{0}', space=vmem, size = 0x2000, scoped, tag = 'input window, operand 5, single buffered']
    #allocation11 [shape = 's32[1]{0}', space=sflag, size = 0x4, scoped, tag = 'scoped memory for tpu_custom_call.1']
    #allocation12 [shape = 'u8[512]{0}', space=vmem, size = 0x400, scoped, tag = 'input window, operand 6, single buffered']
    #allocation13 [shape = 'u8[8192]{0}', space=vmem, size = 0x2000, scoped, tag = 'output window, operand 0, single buffered']
    %14 = vsyncpa [#allocation5], 0
    %15 = vsyncpa [#allocation8], 0
    %16 = vsyncpa [#allocation11], 0
    %17 = vsyncpa [#allocation6], 0
    // Predicated region
    $region2: #{tpu_custom_call.1} parent=1 // pred_check
      _
    $region3: #{tpu_custom_call.1} parent=1 // pred_check_branch
      %19 = sbr.rel (0) target = $region5
    $region4: #{tpu_custom_call.1} parent=1 // pred_region
      _
    $region5: #{tpu_custom_call.1} parent=1 // pred_fallthru
      _
    // Predicated region
    $region6: #{tpu_custom_call.1} parent=1 // pred_check
      _
    $region7: #{tpu_custom_call.1} parent=1 // pred_check_branch
      %21 = sbr.rel (0) target = $region9
    $region8: #{tpu_custom_call.1} parent=1 // pred_region
      %s23 = ssub.s32 32, 32
      %24 = vsyncadd [#allocation5], %s23
      %s26 = sshll.u32 [#allocation4], 4
      %s27 = int_to_ptr.vmem [resolvable:$true] %s26
      %29 = dma.hbm_to_vmem [thread:$0]  %s1, 32, %s27, [#allocation5]
    $region9: #{tpu_custom_call.1} parent=1 // pred_fallthru
      _
    // Predicated region
    $region10: #{tpu_custom_call.1} parent=1 // pred_check
      _
    $region11: #{tpu_custom_call.1} parent=1 // pred_check_branch
      %31 = sbr.rel (0) target = $region13
    $region12: #{tpu_custom_call.1} parent=1 // pred_region
      _
    $region13: #{tpu_custom_call.1} parent=1 // pred_fallthru
      _
    // Predicated region
    $region14: #{tpu_custom_call.1} parent=1 // pred_check
      _
    $region15: #{tpu_custom_call.1} parent=1 // pred_check_branch
      %33 = sbr.rel (0) target = $region17
    $region16: #{tpu_custom_call.1} parent=1 // pred_region
      %s35 = ssub.s32 16, 16
      %36 = vsyncadd [#allocation8], %s35
      %s38 = sshll.u32 [#allocation7], 4
      %s39 = int_to_ptr.vmem [resolvable:$true] %s38
      %41 = dma.hbm_to_vmem [thread:$0]  %s3, 16, %s39, [#allocation8]
    $region17: #{tpu_custom_call.1} parent=1 // pred_fallthru
      _
    // Predicated region
    $region18: #{tpu_custom_call.1} parent=1 // pred_check
      _
    $region19: #{tpu_custom_call.1} parent=1 // pred_check_branch
      %43 = sbr.rel (0) target = $region21
    $region20: #{tpu_custom_call.1} parent=1 // pred_region
      %s45 = ssub.s32 256, 256
      %46 = vsyncadd [#allocation8], %s45
      %s47 = sshll.u32 [#allocation9], 4
      %s48 = int_to_ptr.vmem [resolvable:$true] %s47
      %53 = dma.hbm_to_vmem [thread:$0]  %s4, 256, %s48, [#allocation8], 64, 64, 4
    $region21: #{tpu_custom_call.1} parent=1 // pred_fallthru
      _
    // Predicated region
    $region22: #{tpu_custom_call.1} parent=1 // pred_check
      _
    $region23: #{tpu_custom_call.1} parent=1 // pred_check_branch
      %55 = sbr.rel (0) target = $region25
    $region24: #{tpu_custom_call.1} parent=1 // pred_region
      %s57 = ssub.s32 256, 256
      %58 = vsyncadd [#allocation11], %s57
      %s59 = sshll.u32 [#allocation10], 4
      %s60 = int_to_ptr.vmem [resolvable:$true] %s59
      %65 = dma.hbm_to_vmem [thread:$0]  %s5, 256, %s60, [#allocation11], 64, 64, 4
    $region25: #{tpu_custom_call.1} parent=1 // pred_fallthru
      _
    // Predicated region
    $region26: #{tpu_custom_call.1} parent=1 // pred_check
      _
    $region27: #{tpu_custom_call.1} parent=1 // pred_check_branch
      %67 = sbr.rel (0) target = $region29
    $region28: #{tpu_custom_call.1} parent=1 // pred_region
      %s69 = ssub.s32 16, 16
      %70 = vsyncadd [#allocation11], %s69
      %s72 = sshll.u32 [#allocation12], 4
      %s73 = int_to_ptr.vmem [resolvable:$true] %s72
      %75 = dma.hbm_to_vmem [thread:$0]  %s6, 16, %s73, [#allocation11]
    $region29: #{tpu_custom_call.1} parent=1 // pred_fallthru
      _
    // Predicated region
    $region30: #{tpu_custom_call.1} parent=1 // pred_check
      _
    $region31: #{tpu_custom_call.1} parent=1 // pred_check_branch
      %77 = sbr.rel (0) target = $region33
    $region32: #{tpu_custom_call.1} parent=1 // pred_region
      _
    $region33: #{tpu_custom_call.1} parent=1 // pred_fallthru
      _
    // Predicated region
    $region34: #{tpu_custom_call.1} parent=1 // pred_check
      _
    $region35: #{tpu_custom_call.1} parent=1 // pred_check_branch
      %79 = sbr.rel (0) target = $region37
    $region36: #{tpu_custom_call.1} parent=1 // pred_region
      _
    $region37: #{tpu_custom_call.1} parent=1 // pred_fallthru
      _
    // Predicated region
    $region38: #{tpu_custom_call.1} parent=1 // pred_check
      _
    $region39: #{tpu_custom_call.1} parent=1 // pred_check_branch
      %81 = sbr.rel (0) target = $region41
    $region40: #{tpu_custom_call.1} parent=1 // pred_region
      %82 = dma.done [#allocation5], 32
    $region41: #{tpu_custom_call.1} parent=1 // pred_fallthru
      _
    // Predicated region
    $region42: #{tpu_custom_call.1} parent=1 // pred_check
      _
    $region43: #{tpu_custom_call.1} parent=1 // pred_check_branch
      %84 = sbr.rel (0) target = $region45
    $region44: #{tpu_custom_call.1} parent=1 // pred_region
      %85 = dma.done [#allocation8], 16
    $region45: #{tpu_custom_call.1} parent=1 // pred_fallthru
      _
    // Predicated region
    $region46: #{tpu_custom_call.1} parent=1 // pred_check
      _
    $region47: #{tpu_custom_call.1} parent=1 // pred_check_branch
      %87 = sbr.rel (0) target = $region49
    $region48: #{tpu_custom_call.1} parent=1 // pred_region
      %88 = dma.done [#allocation8], 256
    $region49: #{tpu_custom_call.1} parent=1 // pred_fallthru
      _
    // Predicated region
    $region50: #{tpu_custom_call.1} parent=1 // pred_check
      _
    $region51: #{tpu_custom_call.1} parent=1 // pred_check_branch
      %90 = sbr.rel (0) target = $region53
    $region52: #{tpu_custom_call.1} parent=1 // pred_region
      %91 = dma.done [#allocation11], 256
    $region53: #{tpu_custom_call.1} parent=1 // pred_fallthru
      _
    // Predicated region
    $region54: #{tpu_custom_call.1} parent=1 // pred_check
      _
    $region55: #{tpu_custom_call.1} parent=1 // pred_check_branch
      %93 = sbr.rel (0) target = $region57
    $region56: #{tpu_custom_call.1} parent=1 // pred_region
      %94 = dma.done [#allocation11], 16
    $region57: #{tpu_custom_call.1} parent=1 // pred_fallthru
      _
    %v96 = vld [vmem:[%s0] sm:$0xf]
    %v97 = vld [vmem:[%s0 + $0x4] sm:$0xf]
    %v98 = vld [vmem:[#allocation4] sm:$0x3]
    %v99 = vld [vmem:[%s2] sm:$0xf]
    %v100 = vld [vmem:[%s2 + $0x4] sm:$0xf]
    %v101 = vld [vmem:[%s2 + $0x8] sm:$0xf]
    %v102 = vld [vmem:[%s2 + $0xc] sm:$0xf]
    %v103 = vld [vmem:[#allocation7] sm:$0x1]
    %v105 = vlaneseq
    %v106 = vshrl.u32 %v105, 7
    %v107 = vsub.s32 0, %v106
    %v108 = vrot.slane %v103, %v107
    %v112 = vunpack.c.l.b16 %v96
    %v113 = vunpack.c.l.b16 %v97
    %v114 = vpack.c.b16 %v113, %v112
    %vm115 = vcmask 31744
    %v117 = vsel %vm115, %v114, 0
    %vm119 = vcmask 1041408
    %v121 = vsel %vm119, %v98, 0
    %123 = vmatprep.subr.bf16.mxu0 0
    %124 = vmatpush1.bf16.msra.mxu0 %v121
    %125 = vmatprep.subr.bf16.mxu0 0
    %126 = vmatpush1.bf16.msra.mxu0 0
    %127 = vmatprep.subr.bf16.mxu0 0
    %128 = vmatpush1.bf16.msra.mxu0 0
    %129 = vmatprep.subr.bf16.mxu0 0
    %130 = vmatpush1.bf16.msra.mxu0 0
    %131 = vmatprep.subr.bf16.mxu0 0
    %132 = vmatpush1.bf16.msra.mxu0 0
    %133 = vmatprep.subr.bf16.mxu0 0
    %134 = vmatpush1.bf16.msra.mxu0 0
    %135 = vmatprep.subr.bf16.mxu0 0
    %136 = vmatpush1.bf16.msra.mxu0 0
    %137 = vmatprep.subr.bf16.mxu0 0
    %138 = vmatpush1.bf16.msra.mxu0 0
    %139 = vmatprep.subr.bf16.mxu0 0
    %140 = vmatpush1.bf16.msra.mxu0 0
    %141 = vmatprep.subr.bf16.mxu0 0
    %142 = vmatpush1.bf16.msra.mxu0 0
    %143 = vmatprep.subr.bf16.mxu0 0
    %144 = vmatpush1.bf16.msra.mxu0 0
    %145 = vmatprep.subr.bf16.mxu0 0
    %146 = vmatpush1.bf16.msra.mxu0 0
    %147 = vmatprep.subr.bf16.mxu0 0
    %148 = vmatpush1.bf16.msra.mxu0 0
    %149 = vmatprep.subr.bf16.mxu0 0
    %150 = vmatpush1.bf16.msra.mxu0 0
    %151 = vmatprep.subr.bf16.mxu0 0
    %152 = vmatpush1.bf16.msra.mxu0 0
    %153 = vmatprep.subr.bf16.mxu0 0
    %154 = vmatpush1.bf16.msra.mxu0 0
    %155 = vmatprep.mubr.bf16.mxu0 0
    %156 = vmatmul.mubr.bf16.gmra.mrb[0].mxu0 %v117
    %v157 = vpop.f32.mrb[0].mxu0
    %v158 = vadd.f32 %v108, %v157
    %v159 = vpop.f32.mrb[0].mxu0
    %v160 = vpop.f32.mrb[0].mxu0
    %v161 = vadd.f32 %v108, %v160
    %v162 = vpop.f32.mrb[0].mxu0
    %163 = vdwg.mxu0
    %164 = vst [vmem:[#allocation2] sm:$0xff] %v158
    %165 = vst [vmem:[#allocation2 + $0x8] sm:$0xff] %v161
    %v166 = vld [vmem:[#allocation2] sm:$0x3]
    %v167 = vxor.u32 %v166, 2147483648
    %v168 = vmul.f32 %v167, 1.442695
    %v169 = vpow.pop %v168
    %v170 = vadd.f32 %v169, 1.0
    %v171 = vrcp.pop %v170
    %v172 = vmul.f32 1.0, %v171
    %v173 = vtanh.pop %v166
    %175 = vrot.lane.b32.xlu0 %v173, 32
    %v176 = vpop.permute.xlu0 %175
    %v178 = vmul.f32 %v172, %v176
    %v179 = vtanh.pop %v178
    %181 = vrot.lane.b32.xlu0 %v179, 64
    %v182 = vpop.permute.xlu0 %181
    %v184 = vmul.f32 %v172, %v182
    %186 = vrot.lane.b32.xlu0 %v184, 64
    %v187 = vpop.permute.xlu0 %186
    %vm189 = vcmask 254976
    %190 = vst.msk [vmem:[#allocation3] sm:$0x3] %vm189, %v187
    %v191 = vld [vmem:[#allocation2 + $0x2] sm:$0x3]
    %v192 = vpack.c.bf16 %v184, %v184
    %194 = vrot.lane.b32.xlu0 %v192, 64
    %v195 = vpop.permute.xlu0 %194
    %v200 = vunpack.c.l.b16 %v99
    %v201 = vunpack.c.l.b16 %v100
    %v202 = vunpack.c.l.b16 %v101
    %v203 = vunpack.c.l.b16 %v102
    %v204 = vpack.c.b16 %v201, %v200
    %v205 = vpack.c.b16 %v203, %v202
    %vm208 = vcmask 261120
    %v210 = vsel %vm208, %v195, 0
    %212 = vmatprep.subr.bf16.mxu0 0
    %213 = vmatpush1.bf16.msra.mxu0 %v204
    %214 = vmatprep.subr.bf16.mxu0 0
    %215 = vmatpush1.bf16.msra.mxu0 %v205
    %216 = vmatprep.subr.bf16.mxu0 0
    %217 = vmatpush1.bf16.msra.mxu0 0
    %218 = vmatprep.subr.bf16.mxu0 0
    %219 = vmatpush1.bf16.msra.mxu0 0
    %220 = vmatprep.subr.bf16.mxu0 0
    %221 = vmatpush1.bf16.msra.mxu0 0
    %222 = vmatprep.subr.bf16.mxu0 0
    %223 = vmatpush1.bf16.msra.mxu0 0
    %224 = vmatprep.subr.bf16.mxu0 0
    %225 = vmatpush1.bf16.msra.mxu0 0
    %226 = vmatprep.subr.bf16.mxu0 0
    %227 = vmatpush1.bf16.msra.mxu0 0
    %228 = vmatprep.subr.bf16.mxu0 0
    %229 = vmatpush1.bf16.msra.mxu0 0
    %230 = vmatprep.subr.bf16.mxu0 0
    %231 = vmatpush1.bf16.msra.mxu0 0
    %232 = vmatprep.subr.bf16.mxu0 0
    %233 = vmatpush1.bf16.msra.mxu0 0
    %234 = vmatprep.subr.bf16.mxu0 0
    %235 = vmatpush1.bf16.msra.mxu0 0
    %236 = vmatprep.subr.bf16.mxu0 0
    %237 = vmatpush1.bf16.msra.mxu0 0
    %238 = vmatprep.subr.bf16.mxu0 0
    %239 = vmatpush1.bf16.msra.mxu0 0
    %240 = vmatprep.subr.bf16.mxu0 0
    %241 = vmatpush1.bf16.msra.mxu0 0
    %242 = vmatprep.subr.bf16.mxu0 0
    %243 = vmatpush1.bf16.msra.mxu0 0
    %244 = vmatprep.mubr.bf16.mxu0 0
    %245 = vmatmul.mubr.bf16.gmra.mrb[0].mxu0 %v210
    %v246 = vpop.f32.mrb[0].mxu0
    %v247 = vadd.f32 0.0, %v246
    %v248 = vpop.f32.mrb[0].mxu0
    %v249 = vpop.f32.mrb[0].mxu0
    %v250 = vpop.f32.mrb[0].mxu0
    %251 = vdwg.mxu0
    %v252 = vadd.f32 %v191, %v247
    %v253 = vxor.u32 %v252, 2147483648
    %v254 = vmul.f32 %v253, 1.442695
    %v255 = vpow.pop %v254
    %v256 = vadd.f32 %v255, 1.0
    %v257 = vrcp.pop %v256
    %v258 = vmul.f32 1.0, %v257
    %v259 = vtanh.pop %v252
    %261 = vrot.lane.b32.xlu0 %v178, 32
    %v262 = vpop.permute.xlu0 %261
    %v264 = vmul.f32 %v258, %v262
    %266 = vrot.lane.b32.xlu0 %v259, 32
    %v267 = vpop.permute.xlu0 %266
    %v269 = vmul.f32 %v258, %v267
    %271 = vrot.lane.b32.xlu0 %v269, 32
    %v272 = vpop.permute.xlu0 %271
    %v274 = vadd.f32 %v264, %v272
    %v275 = vtanh.pop %v274
    %277 = vrot.lane.b32.xlu0 %v275, 32
    %v278 = vpop.permute.xlu0 %277
    %v280 = vmul.f32 %v258, %v278
    %282 = vrot.lane.b32.xlu0 %v280, 64
    %v283 = vpop.permute.xlu0 %282
    %285 = vst.msk [vmem:[#allocation3 + $0x2] sm:$0x3] %vm189, %v283
    %v286 = vld [vmem:[#allocation2 + $0x4] sm:$0x3]
    %v287 = vpack.c.bf16 %v280, %v280
    %289 = vrot.lane.b32.xlu0 %v287, 64
    %v290 = vpop.permute.xlu0 %289
    %v292 = vsel %vm208, %v290, 0
    %294 = vmatprep.subr.bf16.mxu0 0
    %295 = vmatpush1.bf16.msra.mxu0 %v204
    %296 = vmatprep.subr.bf16.mxu0 0
    %297 = vmatpush1.bf16.msra.mxu0 %v205
    %298 = vmatprep.subr.bf16.mxu0 0
    %299 = vmatpush1.bf16.msra.mxu0 0
    %300 = vmatprep.subr.bf16.mxu0 0
    %301 = vmatpush1.bf16.msra.mxu0 0
    %302 = vmatprep.subr.bf16.mxu0 0
    %303 = vmatpush1.bf16.msra.mxu0 0
    %304 = vmatprep.subr.bf16.mxu0 0
    %305 = vmatpush1.bf16.msra.mxu0 0
    %306 = vmatprep.subr.bf16.mxu0 0
    %307 = vmatpush1.bf16.msra.mxu0 0
    %308 = vmatprep.subr.bf16.mxu0 0
    %309 = vmatpush1.bf16.msra.mxu0 0
    %310 = vmatprep.subr.bf16.mxu0 0
    %311 = vmatpush1.bf16.msra.mxu0 0
    %312 = vmatprep.subr.bf16.mxu0 0
    %313 = vmatpush1.bf16.msra.mxu0 0
    %314 = vmatprep.subr.bf16.mxu0 0
    %315 = vmatpush1.bf16.msra.mxu0 0
    %316 = vmatprep.subr.bf16.mxu0 0
    %317 = vmatpush1.bf16.msra.mxu0 0
    %318 = vmatprep.subr.bf16.mxu0 0
    %319 = vmatpush1.bf16.msra.mxu0 0
    %320 = vmatprep.subr.bf16.mxu0 0
    %321 = vmatpush1.bf16.msra.mxu0 0
    %322 = vmatprep.subr.bf16.mxu0 0
    %323 = vmatpush1.bf16.msra.mxu0 0
    %324 = vmatprep.subr.bf16.mxu0 0
    %325 = vmatpush1.bf16.msra.mxu0 0
    %326 = vmatprep.mubr.bf16.mxu0 0
    %327 = vmatmul.mubr.bf16.gmra.mrb[0].mxu0 %v292
    %v328 = vpop.f32.mrb[0].mxu0
    %v329 = vadd.f32 0.0, %v328
    %v330 = vpop.f32.mrb[0].mxu0
    %v331 = vpop.f32.mrb[0].mxu0
    %v332 = vpop.f32.mrb[0].mxu0
    %333 = vdwg.mxu0
    %v334 = vadd.f32 %v286, %v329
    %v335 = vxor.u32 %v334, 2147483648
    %v336 = vmul.f32 %v335, 1.442695
    %v337 = vpow.pop %v336
    %v338 = vadd.f32 %v337, 1.0
    %v339 = vrcp.pop %v338
    %v340 = vmul.f32 1.0, %v339
    %v341 = vtanh.pop %v334
    %v342 = vmul.f32 %v340, %v274
    %344 = vrot.lane.b32.xlu0 %v341, 32
    %v345 = vpop.permute.xlu0 %344
    %v347 = vmul.f32 %v340, %v345
    %349 = vrot.lane.b32.xlu0 %v347, 32
    %v350 = vpop.permute.xlu0 %349
    %v352 = vadd.f32 %v342, %v350
    %v353 = vtanh.pop %v352
    %355 = vrot.lane.b32.xlu0 %v353, 32
    %v356 = vpop.permute.xlu0 %355
    %v358 = vmul.f32 %v340, %v356
    %360 = vrot.lane.b32.xlu0 %v358, 64
    %v361 = vpop.permute.xlu0 %360
    %363 = vst.msk [vmem:[#allocation3 + $0x4] sm:$0x3] %vm189, %v361
    %v364 = vld [vmem:[#allocation2 + $0x6] sm:$0x3]
    %v365 = vpack.c.bf16 %v358, %v358
    %367 = vrot.lane.b32.xlu0 %v365, 64
    %v368 = vpop.permute.xlu0 %367
    %v370 = vsel %vm208, %v368, 0
    %372 = vmatprep.subr.bf16.mxu0 0
    %373 = vmatpush1.bf16.msra.mxu0 %v204
    %374 = vmatprep.subr.bf16.mxu0 0
    %375 = vmatpush1.bf16.msra.mxu0 %v205
    %376 = vmatprep.subr.bf16.mxu0 0
    %377 = vmatpush1.bf16.msra.mxu0 0
    %378 = vmatprep.subr.bf16.mxu0 0
    %379 = vmatpush1.bf16.msra.mxu0 0
    %380 = vmatprep.subr.bf16.mxu0 0
    %381 = vmatpush1.bf16.msra.mxu0 0
    %382 = vmatprep.subr.bf16.mxu0 0
    %383 = vmatpush1.bf16.msra.mxu0 0
    %384 = vmatprep.subr.bf16.mxu0 0
    %385 = vmatpush1.bf16.msra.mxu0 0
    %386 = vmatprep.subr.bf16.mxu0 0
    %387 = vmatpush1.bf16.msra.mxu0 0
    %388 = vmatprep.subr.bf16.mxu0 0
    %389 = vmatpush1.bf16.msra.mxu0 0
    %390 = vmatprep.subr.bf16.mxu0 0
    %391 = vmatpush1.bf16.msra.mxu0 0
    %392 = vmatprep.subr.bf16.mxu0 0
    %393 = vmatpush1.bf16.msra.mxu0 0
    %394 = vmatprep.subr.bf16.mxu0 0
    %395 = vmatpush1.bf16.msra.mxu0 0
    %396 = vmatprep.subr.bf16.mxu0 0
    %397 = vmatpush1.bf16.msra.mxu0 0
    %398 = vmatprep.subr.bf16.mxu0 0
    %399 = vmatpush1.bf16.msra.mxu0 0
    %400 = vmatprep.subr.bf16.mxu0 0
    %401 = vmatpush1.bf16.msra.mxu0 0
    %402 = vmatprep.subr.bf16.mxu0 0
    %403 = vmatpush1.bf16.msra.mxu0 0
    %404 = vmatprep.mubr.bf16.mxu0 0
    %405 = vmatmul.mubr.bf16.gmra.mrb[0].mxu0 %v370
    %v406 = vpop.f32.mrb[0].mxu0
    %v407 = vadd.f32 0.0, %v406
    %v408 = vpop.f32.mrb[0].mxu0
    %v409 = vpop.f32.mrb[0].mxu0
    %v410 = vpop.f32.mrb[0].mxu0
    %411 = vdwg.mxu0
    %v412 = vadd.f32 %v364, %v407
    %v413 = vxor.u32 %v412, 2147483648
    %v414 = vmul.f32 %v413, 1.442695
    %v415 = vpow.pop %v414
    %v416 = vadd.f32 %v415, 1.0
    %v417 = vrcp.pop %v416
    %v418 = vmul.f32 1.0, %v417
    %v419 = vtanh.pop %v412
    %v420 = vmul.f32 %v418, %v352
    %422 = vrot.lane.b32.xlu0 %v419, 32
    %v423 = vpop.permute.xlu0 %422
    %v425 = vmul.f32 %v418, %v423
    %427 = vrot.lane.b32.xlu0 %v425, 32
    %v428 = vpop.permute.xlu0 %427
    %v430 = vadd.f32 %v420, %v428
    %v431 = vtanh.pop %v430
    %433 = vrot.lane.b32.xlu0 %v431, 32
    %v434 = vpop.permute.xlu0 %433
    %v436 = vmul.f32 %v418, %v434
    %438 = vrot.lane.b32.xlu0 %v436, 64
    %v439 = vpop.permute.xlu0 %438
    %441 = vst.msk [vmem:[#allocation3 + $0x6] sm:$0x3] %vm189, %v439
    %v442 = vld [vmem:[#allocation2 + $0x8] sm:$0x3]
    %v443 = vpack.c.bf16 %v436, %v436
    %445 = vrot.lane.b32.xlu0 %v443, 64
    %v446 = vpop.permute.xlu0 %445
    %v448 = vsel %vm208, %v446, 0
    %450 = vmatprep.subr.bf16.mxu0 0
    %451 = vmatpush1.bf16.msra.mxu0 %v204
    %452 = vmatprep.subr.bf16.mxu0 0
    %453 = vmatpush1.bf16.msra.mxu0 %v205
    %454 = vmatprep.subr.bf16.mxu0 0
    %455 = vmatpush1.bf16.msra.mxu0 0
    %456 = vmatprep.subr.bf16.mxu0 0
    %457 = vmatpush1.bf16.msra.mxu0 0
    %458 = vmatprep.subr.bf16.mxu0 0
    %459 = vmatpush1.bf16.msra.mxu0 0
    %460 = vmatprep.subr.bf16.mxu0 0
    %461 = vmatpush1.bf16.msra.mxu0 0
    %462 = vmatprep.subr.bf16.mxu0 0
    %463 = vmatpush1.bf16.msra.mxu0 0
    %464 = vmatprep.subr.bf16.mxu0 0
    %465 = vmatpush1.bf16.msra.mxu0 0
    %466 = vmatprep.subr.bf16.mxu0 0
    %467 = vmatpush1.bf16.msra.mxu0 0
    %468 = vmatprep.subr.bf16.mxu0 0
    %469 = vmatpush1.bf16.msra.mxu0 0
    %470 = vmatprep.subr.bf16.mxu0 0
    %471 = vmatpush1.bf16.msra.mxu0 0
    %472 = vmatprep.subr.bf16.mxu0 0
    %473 = vmatpush1.bf16.msra.mxu0 0
    %474 = vmatprep.subr.bf16.mxu0 0
    %475 = vmatpush1.bf16.msra.mxu0 0
    %476 = vmatprep.subr.bf16.mxu0 0
    %477 = vmatpush1.bf16.msra.mxu0 0
    %478 = vmatprep.subr.bf16.mxu0 0
    %479 = vmatpush1.bf16.msra.mxu0 0
    %480 = vmatprep.subr.bf16.mxu0 0
    %481 = vmatpush1.bf16.msra.mxu0 0
    %482 = vmatprep.mubr.bf16.mxu0 0
    %483 = vmatmul.mubr.bf16.gmra.mrb[0].mxu0 %v448
    %v484 = vpop.f32.mrb[0].mxu0
    %v485 = vadd.f32 0.0, %v484
    %v486 = vpop.f32.mrb[0].mxu0
    %v487 = vpop.f32.mrb[0].mxu0
    %v488 = vpop.f32.mrb[0].mxu0
    %489 = vdwg.mxu0
    %v490 = vadd.f32 %v442, %v485
    %v491 = vxor.u32 %v490, 2147483648
    %v492 = vmul.f32 %v491, 1.442695
    %v493 = vpow.pop %v492
    %v494 = vadd.f32 %v493, 1.0
    %v495 = vrcp.pop %v494
    %v496 = vmul.f32 1.0, %v495
    %v497 = vtanh.pop %v490
    %v498 = vmul.f32 %v496, %v430
    %500 = vrot.lane.b32.xlu0 %v497, 32
    %v501 = vpop.permute.xlu0 %500
    %v503 = vmul.f32 %v496, %v501
    %505 = vrot.lane.b32.xlu0 %v503, 32
    %v506 = vpop.permute.xlu0 %505
    %v508 = vadd.f32 %v498, %v506
    %v509 = vtanh.pop %v508
    %511 = vrot.lane.b32.xlu0 %v509, 32
    %v512 = vpop.permute.xlu0 %511
    %v514 = vmul.f32 %v496, %v512
    %516 = vrot.lane.b32.xlu0 %v514, 64
    %v517 = vpop.permute.xlu0 %516
    %519 = vst.msk [vmem:[#allocation3 + $0x8] sm:$0x3] %vm189, %v517
    %v520 = vld [vmem:[#allocation2 + $0xa] sm:$0x3]
    %v521 = vpack.c.bf16 %v514, %v514
    %523 = vrot.lane.b32.xlu0 %v521, 64
    %v524 = vpop.permute.xlu0 %523
    %v526 = vsel %vm208, %v524, 0
    %528 = vmatprep.subr.bf16.mxu0 0
    %529 = vmatpush1.bf16.msra.mxu0 %v204
    %530 = vmatprep.subr.bf16.mxu0 0
    %531 = vmatpush1.bf16.msra.mxu0 %v205
    %532 = vmatprep.subr.bf16.mxu0 0
    %533 = vmatpush1.bf16.msra.mxu0 0
    %534 = vmatprep.subr.bf16.mxu0 0
    %535 = vmatpush1.bf16.msra.mxu0 0
    %536 = vmatprep.subr.bf16.mxu0 0
    %537 = vmatpush1.bf16.msra.mxu0 0
    %538 = vmatprep.subr.bf16.mxu0 0
    %539 = vmatpush1.bf16.msra.mxu0 0
    %540 = vmatprep.subr.bf16.mxu0 0
    %541 = vmatpush1.bf16.msra.mxu0 0
    %542 = vmatprep.subr.bf16.mxu0 0
    %543 = vmatpush1.bf16.msra.mxu0 0
    %544 = vmatprep.subr.bf16.mxu0 0
    %545 = vmatpush1.bf16.msra.mxu0 0
    %546 = vmatprep.subr.bf16.mxu0 0
    %547 = vmatpush1.bf16.msra.mxu0 0
    %548 = vmatprep.subr.bf16.mxu0 0
    %549 = vmatpush1.bf16.msra.mxu0 0
    %550 = vmatprep.subr.bf16.mxu0 0
    %551 = vmatpush1.bf16.msra.mxu0 0
    %552 = vmatprep.subr.bf16.mxu0 0
    %553 = vmatpush1.bf16.msra.mxu0 0
    %554 = vmatprep.subr.bf16.mxu0 0
    %555 = vmatpush1.bf16.msra.mxu0 0
    %556 = vmatprep.subr.bf16.mxu0 0
    %557 = vmatpush1.bf16.msra.mxu0 0
    %558 = vmatprep.subr.bf16.mxu0 0
    %559 = vmatpush1.bf16.msra.mxu0 0
    %560 = vmatprep.mubr.bf16.mxu0 0
    %561 = vmatmul.mubr.bf16.gmra.mrb[0].mxu0 %v526
    %v562 = vpop.f32.mrb[0].mxu0
    %v563 = vadd.f32 0.0, %v562
    %v564 = vpop.f32.mrb[0].mxu0
    %v565 = vpop.f32.mrb[0].mxu0
    %v566 = vpop.f32.mrb[0].mxu0
    %567 = vdwg.mxu0
    %v568 = vadd.f32 %v520, %v563
    %v569 = vxor.u32 %v568, 2147483648
    %v570 = vmul.f32 %v569, 1.442695
    %v571 = vpow.pop %v570
    %v572 = vadd.f32 %v571, 1.0
    %v573 = vrcp.pop %v572
    %v574 = vmul.f32 1.0, %v573
    %v575 = vtanh.pop %v568
    %v576 = vmul.f32 %v574, %v508
    %578 = vrot.lane.b32.xlu0 %v575, 32
    %v579 = vpop.permute.xlu0 %578
    %v581 = vmul.f32 %v574, %v579
    %583 = vrot.lane.b32.xlu0 %v581, 32
    %v584 = vpop.permute.xlu0 %583
    %v586 = vadd.f32 %v576, %v584
    %v587 = vtanh.pop %v586
    %589 = vrot.lane.b32.xlu0 %v587, 32
    %v590 = vpop.permute.xlu0 %589
    %v592 = vmul.f32 %v574, %v590
    %594 = vrot.lane.b32.xlu0 %v592, 64
    %v595 = vpop.permute.xlu0 %594
    %597 = vst.msk [vmem:[#allocation3 + $0xa] sm:$0x3] %vm189, %v595
    %v598 = vld [vmem:[#allocation2 + $0xc] sm:$0x3]
    %v599 = vpack.c.bf16 %v592, %v592
    %601 = vrot.lane.b32.xlu0 %v599, 64
    %v602 = vpop.permute.xlu0 %601
    %v604 = vsel %vm208, %v602, 0
    %606 = vmatprep.subr.bf16.mxu0 0
    %607 = vmatpush1.bf16.msra.mxu0 %v204
    %608 = vmatprep.subr.bf16.mxu0 0
    %609 = vmatpush1.bf16.msra.mxu0 %v205
    %610 = vmatprep.subr.bf16.mxu0 0
    %611 = vmatpush1.bf16.msra.mxu0 0
    %612 = vmatprep.subr.bf16.mxu0 0
    %613 = vmatpush1.bf16.msra.mxu0 0
    %614 = vmatprep.subr.bf16.mxu0 0
    %615 = vmatpush1.bf16.msra.mxu0 0
    %616 = vmatprep.subr.bf16.mxu0 0
    %617 = vmatpush1.bf16.msra.mxu0 0
    %618 = vmatprep.subr.bf16.mxu0 0
    %619 = vmatpush1.bf16.msra.mxu0 0
    %620 = vmatprep.subr.bf16.mxu0 0
    %621 = vmatpush1.bf16.msra.mxu0 0
    %622 = vmatprep.subr.bf16.mxu0 0
    %623 = vmatpush1.bf16.msra.mxu0 0
    %624 = vmatprep.subr.bf16.mxu0 0
    %625 = vmatpush1.bf16.msra.mxu0 0
    %626 = vmatprep.subr.bf16.mxu0 0
    %627 = vmatpush1.bf16.msra.mxu0 0
    %628 = vmatprep.subr.bf16.mxu0 0
    %629 = vmatpush1.bf16.msra.mxu0 0
    %630 = vmatprep.subr.bf16.mxu0 0
    %631 = vmatpush1.bf16.msra.mxu0 0
    %632 = vmatprep.subr.bf16.mxu0 0
    %633 = vmatpush1.bf16.msra.mxu0 0
    %634 = vmatprep.subr.bf16.mxu0 0
    %635 = vmatpush1.bf16.msra.mxu0 0
    %636 = vmatprep.subr.bf16.mxu0 0
    %637 = vmatpush1.bf16.msra.mxu0 0
    %638 = vmatprep.mubr.bf16.mxu0 0
    %639 = vmatmul.mubr.bf16.gmra.mrb[0].mxu0 %v604
    %v640 = vpop.f32.mrb[0].mxu0
    %v641 = vadd.f32 0.0, %v640
    %v642 = vpop.f32.mrb[0].mxu0
    %v643 = vpop.f32.mrb[0].mxu0
    %v644 = vpop.f32.mrb[0].mxu0
    %645 = vdwg.mxu0
    %v646 = vadd.f32 %v598, %v641
    %v647 = vxor.u32 %v646, 2147483648
    %v648 = vmul.f32 %v647, 1.442695
    %v649 = vpow.pop %v648
    %v650 = vadd.f32 %v649, 1.0
    %v651 = vrcp.pop %v650
    %v652 = vmul.f32 1.0, %v651
    %v653 = vtanh.pop %v646
    %v654 = vmul.f32 %v652, %v586
    %656 = vrot.lane.b32.xlu0 %v653, 32
    %v657 = vpop.permute.xlu0 %656
    %v659 = vmul.f32 %v652, %v657
    %661 = vrot.lane.b32.xlu0 %v659, 32
    %v662 = vpop.permute.xlu0 %661
    %v664 = vadd.f32 %v654, %v662
    %v665 = vtanh.pop %v664
    %667 = vrot.lane.b32.xlu0 %v665, 32
    %v668 = vpop.permute.xlu0 %667
    %v670 = vmul.f32 %v652, %v668
    %672 = vrot.lane.b32.xlu0 %v670, 64
    %v673 = vpop.permute.xlu0 %672
    %675 = vst.msk [vmem:[#allocation3 + $0xc] sm:$0x3] %vm189, %v673
    %v676 = vld [vmem:[#allocation2 + $0xe] sm:$0x3]
    %v677 = vpack.c.bf16 %v670, %v670
    %679 = vrot.lane.b32.xlu0 %v677, 64
    %v680 = vpop.permute.xlu0 %679
    %v682 = vsel %vm208, %v680, 0
    %684 = vmatprep.subr.bf16.mxu0 0
    %685 = vmatpush1.bf16.msra.mxu0 %v204
    %686 = vmatprep.subr.bf16.mxu0 0
    %687 = vmatpush1.bf16.msra.mxu0 %v205
    %688 = vmatprep.subr.bf16.mxu0 0
    %689 = vmatpush1.bf16.msra.mxu0 0
    %690 = vmatprep.subr.bf16.mxu0 0
    %691 = vmatpush1.bf16.msra.mxu0 0
    %692 = vmatprep.subr.bf16.mxu0 0
    %693 = vmatpush1.bf16.msra.mxu0 0
    %694 = vmatprep.subr.bf16.mxu0 0
    %695 = vmatpush1.bf16.msra.mxu0 0
    %696 = vmatprep.subr.bf16.mxu0 0
    %697 = vmatpush1.bf16.msra.mxu0 0
    %698 = vmatprep.subr.bf16.mxu0 0
    %699 = vmatpush1.bf16.msra.mxu0 0
    %700 = vmatprep.subr.bf16.mxu0 0
    %701 = vmatpush1.bf16.msra.mxu0 0
    %702 = vmatprep.subr.bf16.mxu0 0
    %703 = vmatpush1.bf16.msra.mxu0 0
    %704 = vmatprep.subr.bf16.mxu0 0
    %705 = vmatpush1.bf16.msra.mxu0 0
    %706 = vmatprep.subr.bf16.mxu0 0
    %707 = vmatpush1.bf16.msra.mxu0 0
    %708 = vmatprep.subr.bf16.mxu0 0
    %709 = vmatpush1.bf16.msra.mxu0 0
    %710 = vmatprep.subr.bf16.mxu0 0
    %711 = vmatpush1.bf16.msra.mxu0 0
    %712 = vmatprep.subr.bf16.mxu0 0
    %713 = vmatpush1.bf16.msra.mxu0 0
    %714 = vmatprep.subr.bf16.mxu0 0
    %715 = vmatpush1.bf16.msra.mxu0 0
    %716 = vmatprep.mubr.bf16.mxu0 0
    %717 = vmatmul.mubr.bf16.gmra.mrb[0].mxu0 %v682
    %v718 = vpop.f32.mrb[0].mxu0
    %v719 = vadd.f32 0.0, %v718
    %v720 = vpop.f32.mrb[0].mxu0
    %v721 = vpop.f32.mrb[0].mxu0
    %v722 = vpop.f32.mrb[0].mxu0
    %723 = vdwg.mxu0
    %v724 = vadd.f32 %v676, %v719
    %v725 = vxor.u32 %v724, 2147483648
    %v726 = vmul.f32 %v725, 1.442695
    %v727 = vpow.pop %v726
    %v728 = vadd.f32 %v727, 1.0
    %v729 = vrcp.pop %v728
    %v730 = vmul.f32 1.0, %v729
    %v731 = vtanh.pop %v724
    %v732 = vmul.f32 %v730, %v664
    %734 = vrot.lane.b32.xlu0 %v731, 32
    %v735 = vpop.permute.xlu0 %734
    %v737 = vmul.f32 %v730, %v735
    %739 = vrot.lane.b32.xlu0 %v737, 32
    %v740 = vpop.permute.xlu0 %739
    %v742 = vadd.f32 %v732, %v740
    %v743 = vtanh.pop %v742
    %745 = vrot.lane.b32.xlu0 %v743, 32
    %v746 = vpop.permute.xlu0 %745
    %v748 = vmul.f32 %v730, %v746
    %750 = vrot.lane.b32.xlu0 %v748, 64
    %v751 = vpop.permute.xlu0 %750
    %753 = vst.msk [vmem:[#allocation3 + $0xe] sm:$0x3] %vm189, %v751
    %v754 = vld [vmem:[#allocation3] sm:$0xff]
    %v755 = vld [vmem:[#allocation3 + $0x8] sm:$0xff]
    %v756 = vpack.c.bf16 %v755, %v754
    %v757 = vld [vmem:[#allocation9] sm:$0xf]
    %v758 = vld [vmem:[#allocation9 + $0x4] sm:$0xf]
    %v759 = vld [vmem:[#allocation9 + $0x8] sm:$0xf]
    %v760 = vld [vmem:[#allocation9 + $0xc] sm:$0xf]
    %v761 = vld [vmem:[#allocation10] sm:$0xf]
    %v762 = vld [vmem:[#allocation10 + $0x4] sm:$0xf]
    %v763 = vld [vmem:[#allocation10 + $0x8] sm:$0xf]
    %v764 = vld [vmem:[#allocation10 + $0xc] sm:$0xf]
    %v765 = vld [vmem:[#allocation12] sm:$0x1]
    %v767 = vlaneseq
    %v768 = vshrl.u32 %v767, 7
    %v769 = vsub.s32 0, %v768
    %v770 = vrot.slane %v765, %v769
    %v776 = vunpack.c.l.b16 %v757
    %v777 = vunpack.c.l.b16 %v758
    %v778 = vunpack.c.l.b16 %v759
    %v779 = vunpack.c.l.b16 %v760
    %v780 = vpack.c.b16 %v777, %v776
    %v781 = vpack.c.b16 %v779, %v778
    %v785 = vsel %vm208, %v756, 0
    %787 = vmatprep.subr.bf16.mxu0 0
    %788 = vmatpush1.bf16.msra.mxu0 %v780
    %789 = vmatprep.subr.bf16.mxu0 0
    %790 = vmatpush1.bf16.msra.mxu0 %v781
    %791 = vmatprep.subr.bf16.mxu0 0
    %792 = vmatpush1.bf16.msra.mxu0 0
    %793 = vmatprep.subr.bf16.mxu0 0
    %794 = vmatpush1.bf16.msra.mxu0 0
    %795 = vmatprep.subr.bf16.mxu0 0
    %796 = vmatpush1.bf16.msra.mxu0 0
    %797 = vmatprep.subr.bf16.mxu0 0
    %798 = vmatpush1.bf16.msra.mxu0 0
    %799 = vmatprep.subr.bf16.mxu0 0
    %800 = vmatpush1.bf16.msra.mxu0 0
    %801 = vmatprep.subr.bf16.mxu0 0
    %802 = vmatpush1.bf16.msra.mxu0 0
    %803 = vmatprep.subr.bf16.mxu0 0
    %804 = vmatpush1.bf16.msra.mxu0 0
    %805 = vmatprep.subr.bf16.mxu0 0
    %806 = vmatpush1.bf16.msra.mxu0 0
    %807 = vmatprep.subr.bf16.mxu0 0
    %808 = vmatpush1.bf16.msra.mxu0 0
    %809 = vmatprep.subr.bf16.mxu0 0
    %810 = vmatpush1.bf16.msra.mxu0 0
    %811 = vmatprep.subr.bf16.mxu0 0
    %812 = vmatpush1.bf16.msra.mxu0 0
    %813 = vmatprep.subr.bf16.mxu0 0
    %814 = vmatpush1.bf16.msra.mxu0 0
    %815 = vmatprep.subr.bf16.mxu0 0
    %816 = vmatpush1.bf16.msra.mxu0 0
    %817 = vmatprep.subr.bf16.mxu0 0
    %818 = vmatpush1.bf16.msra.mxu0 0
    %819 = vmatprep.mubr.bf16.mxu0 0
    %820 = vmatmul.mubr.bf16.gmra.mrb[0].mxu0 %v785
    %v821 = vpop.f32.mrb[0].mxu0
    %v822 = vadd.f32 %v770, %v821
    %v823 = vpop.f32.mrb[0].mxu0
    %v824 = vpop.f32.mrb[0].mxu0
    %v825 = vadd.f32 %v770, %v824
    %v826 = vpop.f32.mrb[0].mxu0
    %827 = vdwg.mxu0
    %828 = vst [vmem:[#allocation2] sm:$0xff] %v822
    %829 = vst [vmem:[#allocation2 + $0x8] sm:$0xff] %v825
    %v830 = vld [vmem:[#allocation2] sm:$0x3]
    %v831 = vxor.u32 %v830, 2147483648
    %v832 = vmul.f32 %v831, 1.442695
    %v833 = vpow.pop %v832
    %v834 = vadd.f32 %v833, 1.0
    %v835 = vrcp.pop %v834
    %v836 = vmul.f32 1.0, %v835
    %v837 = vtanh.pop %v830
    %839 = vrot.lane.b32.xlu0 %v837, 32
    %v840 = vpop.permute.xlu0 %839
    %v842 = vmul.f32 %v836, %v840
    %v843 = vtanh.pop %v842
    %845 = vrot.lane.b32.xlu0 %v843, 64
    %v846 = vpop.permute.xlu0 %845
    %v848 = vmul.f32 %v836, %v846
    %850 = vrot.lane.b32.xlu0 %v848, 64
    %v851 = vpop.permute.xlu0 %850
    %853 = vst.msk [vmem:[#allocation3] sm:$0x3] %vm189, %v851
    %v854 = vld [vmem:[#allocation2 + $0x2] sm:$0x3]
    %v855 = vpack.c.bf16 %v848, %v848
    %857 = vrot.lane.b32.xlu0 %v855, 64
    %v858 = vpop.permute.xlu0 %857
    %v863 = vunpack.c.l.b16 %v761
    %v864 = vunpack.c.l.b16 %v762
    %v865 = vunpack.c.l.b16 %v763
    %v866 = vunpack.c.l.b16 %v764
    %v867 = vpack.c.b16 %v864, %v863
    %v868 = vpack.c.b16 %v866, %v865
    %v872 = vsel %vm208, %v858, 0
    %874 = vmatprep.subr.bf16.mxu0 0
    %875 = vmatpush1.bf16.msra.mxu0 %v867
    %876 = vmatprep.subr.bf16.mxu0 0
    %877 = vmatpush1.bf16.msra.mxu0 %v868
    %878 = vmatprep.subr.bf16.mxu0 0
    %879 = vmatpush1.bf16.msra.mxu0 0
    %880 = vmatprep.subr.bf16.mxu0 0
    %881 = vmatpush1.bf16.msra.mxu0 0
    %882 = vmatprep.subr.bf16.mxu0 0
    %883 = vmatpush1.bf16.msra.mxu0 0
    %884 = vmatprep.subr.bf16.mxu0 0
    %885 = vmatpush1.bf16.msra.mxu0 0
    %886 = vmatprep.subr.bf16.mxu0 0
    %887 = vmatpush1.bf16.msra.mxu0 0
    %888 = vmatprep.subr.bf16.mxu0 0
    %889 = vmatpush1.bf16.msra.mxu0 0
    %890 = vmatprep.subr.bf16.mxu0 0
    %891 = vmatpush1.bf16.msra.mxu0 0
    %892 = vmatprep.subr.bf16.mxu0 0
    %893 = vmatpush1.bf16.msra.mxu0 0
    %894 = vmatprep.subr.bf16.mxu0 0
    %895 = vmatpush1.bf16.msra.mxu0 0
    %896 = vmatprep.subr.bf16.mxu0 0
    %897 = vmatpush1.bf16.msra.mxu0 0
    %898 = vmatprep.subr.bf16.mxu0 0
    %899 = vmatpush1.bf16.msra.mxu0 0
    %900 = vmatprep.subr.bf16.mxu0 0
    %901 = vmatpush1.bf16.msra.mxu0 0
    %902 = vmatprep.subr.bf16.mxu0 0
    %903 = vmatpush1.bf16.msra.mxu0 0
    %904 = vmatprep.subr.bf16.mxu0 0
    %905 = vmatpush1.bf16.msra.mxu0 0
    %906 = vmatprep.mubr.bf16.mxu0 0
    %907 = vmatmul.mubr.bf16.gmra.mrb[0].mxu0 %v872
    %v908 = vpop.f32.mrb[0].mxu0
    %v909 = vadd.f32 0.0, %v908
    %v910 = vpop.f32.mrb[0].mxu0
    %v911 = vpop.f32.mrb[0].mxu0
    %v912 = vpop.f32.mrb[0].mxu0
    %913 = vdwg.mxu0
    %v914 = vadd.f32 %v854, %v909
    %v915 = vxor.u32 %v914, 2147483648
    %v916 = vmul.f32 %v915, 1.442695
    %v917 = vpow.pop %v916
    %v918 = vadd.f32 %v917, 1.0
    %v919 = vrcp.pop %v918
    %v920 = vmul.f32 1.0, %v919
    %v921 = vtanh.pop %v914
    %923 = vrot.lane.b32.xlu0 %v842, 32
    %v924 = vpop.permute.xlu0 %923
    %v926 = vmul.f32 %v920, %v924
    %928 = vrot.lane.b32.xlu0 %v921, 32
    %v929 = vpop.permute.xlu0 %928
    %v931 = vmul.f32 %v920, %v929
    %933 = vrot.lane.b32.xlu0 %v931, 32
    %v934 = vpop.permute.xlu0 %933
    %v936 = vadd.f32 %v926, %v934
    %v937 = vtanh.pop %v936
    %939 = vrot.lane.b32.xlu0 %v937, 32
    %v940 = vpop.permute.xlu0 %939
    %v942 = vmul.f32 %v920, %v940
    %944 = vrot.lane.b32.xlu0 %v942, 64
    %v945 = vpop.permute.xlu0 %944
    %947 = vst.msk [vmem:[#allocation3 + $0x2] sm:$0x3] %vm189, %v945
    %v948 = vld [vmem:[#allocation2 + $0x4] sm:$0x3]
    %v949 = vpack.c.bf16 %v942, %v942
    %951 = vrot.lane.b32.xlu0 %v949, 64
    %v952 = vpop.permute.xlu0 %951
    %v954 = vsel %vm208, %v952, 0
    %956 = vmatprep.subr.bf16.mxu0 0
    %957 = vmatpush1.bf16.msra.mxu0 %v867
    %958 = vmatprep.subr.bf16.mxu0 0
    %959 = vmatpush1.bf16.msra.mxu0 %v868
    %960 = vmatprep.subr.bf16.mxu0 0
    %961 = vmatpush1.bf16.msra.mxu0 0
    %962 = vmatprep.subr.bf16.mxu0 0
    %963 = vmatpush1.bf16.msra.mxu0 0
    %964 = vmatprep.subr.bf16.mxu0 0
    %965 = vmatpush1.bf16.msra.mxu0 0
    %966 = vmatprep.subr.bf16.mxu0 0
    %967 = vmatpush1.bf16.msra.mxu0 0
    %968 = vmatprep.subr.bf16.mxu0 0
    %969 = vmatpush1.bf16.msra.mxu0 0
    %970 = vmatprep.subr.bf16.mxu0 0
    %971 = vmatpush1.bf16.msra.mxu0 0
    %972 = vmatprep.subr.bf16.mxu0 0
    %973 = vmatpush1.bf16.msra.mxu0 0
    %974 = vmatprep.subr.bf16.mxu0 0
    %975 = vmatpush1.bf16.msra.mxu0 0
    %976 = vmatprep.subr.bf16.mxu0 0
    %977 = vmatpush1.bf16.msra.mxu0 0
    %978 = vmatprep.subr.bf16.mxu0 0
    %979 = vmatpush1.bf16.msra.mxu0 0
    %980 = vmatprep.subr.bf16.mxu0 0
    %981 = vmatpush1.bf16.msra.mxu0 0
    %982 = vmatprep.subr.bf16.mxu0 0
    %983 = vmatpush1.bf16.msra.mxu0 0
    %984 = vmatprep.subr.bf16.mxu0 0
    %985 = vmatpush1.bf16.msra.mxu0 0
    %986 = vmatprep.subr.bf16.mxu0 0
    %987 = vmatpush1.bf16.msra.mxu0 0
    %988 = vmatprep.mubr.bf16.mxu0 0
    %989 = vmatmul.mubr.bf16.gmra.mrb[0].mxu0 %v954
    %v990 = vpop.f32.mrb[0].mxu0
    %v991 = vadd.f32 0.0, %v990
    %v992 = vpop.f32.mrb[0].mxu0
    %v993 = vpop.f32.mrb[0].mxu0
    %v994 = vpop.f32.mrb[0].mxu0
    %995 = vdwg.mxu0
    %v996 = vadd.f32 %v948, %v991
    %v997 = vxor.u32 %v996, 2147483648
    %v998 = vmul.f32 %v997, 1.442695
    %v999 = vpow.pop %v998
    %v1000 = vadd.f32 %v999, 1.0
    %v1001 = vrcp.pop %v1000
    %v1002 = vmul.f32 1.0, %v1001
    %v1003 = vtanh.pop %v996
    %v1004 = vmul.f32 %v1002, %v936
    %1006 = vrot.lane.b32.xlu0 %v1003, 32
    %v1007 = vpop.permute.xlu0 %1006
    %v1009 = vmul.f32 %v1002, %v1007
    %1011 = vrot.lane.b32.xlu0 %v1009, 32
    %v1012 = vpop.permute.xlu0 %1011
    %v1014 = vadd.f32 %v1004, %v1012
    %v1015 = vtanh.pop %v1014
    %1017 = vrot.lane.b32.xlu0 %v1015, 32
    %v1018 = vpop.permute.xlu0 %1017
    %v1020 = vmul.f32 %v1002, %v1018
    %1022 = vrot.lane.b32.xlu0 %v1020, 64
    %v1023 = vpop.permute.xlu0 %1022
    %1025 = vst.msk [vmem:[#allocation3 + $0x4] sm:$0x3] %vm189, %v1023
    %v1026 = vld [vmem:[#allocation2 + $0x6] sm:$0x3]
    %v1027 = vpack.c.bf16 %v1020, %v1020
    %1029 = vrot.lane.b32.xlu0 %v1027, 64
    %v1030 = vpop.permute.xlu0 %1029
    %v1032 = vsel %vm208, %v1030, 0
    %1034 = vmatprep.subr.bf16.mxu0 0
    %1035 = vmatpush1.bf16.msra.mxu0 %v867
    %1036 = vmatprep.subr.bf16.mxu0 0
    %1037 = vmatpush1.bf16.msra.mxu0 %v868
    %1038 = vmatprep.subr.bf16.mxu0 0
    %1039 = vmatpush1.bf16.msra.mxu0 0
    %1040 = vmatprep.subr.bf16.mxu0 0
    %1041 = vmatpush1.bf16.msra.mxu0 0
    %1042 = vmatprep.subr.bf16.mxu0 0
    %1043 = vmatpush1.bf16.msra.mxu0 0
    %1044 = vmatprep.subr.bf16.mxu0 0
    %1045 = vmatpush1.bf16.msra.mxu0 0
    %1046 = vmatprep.subr.bf16.mxu0 0
    %1047 = vmatpush1.bf16.msra.mxu0 0
    %1048 = vmatprep.subr.bf16.mxu0 0
    %1049 = vmatpush1.bf16.msra.mxu0 0
    %1050 = vmatprep.subr.bf16.mxu0 0
    %1051 = vmatpush1.bf16.msra.mxu0 0
    %1052 = vmatprep.subr.bf16.mxu0 0
    %1053 = vmatpush1.bf16.msra.mxu0 0
    %1054 = vmatprep.subr.bf16.mxu0 0
    %1055 = vmatpush1.bf16.msra.mxu0 0
    %1056 = vmatprep.subr.bf16.mxu0 0
    %1057 = vmatpush1.bf16.msra.mxu0 0
    %1058 = vmatprep.subr.bf16.mxu0 0
    %1059 = vmatpush1.bf16.msra.mxu0 0
    %1060 = vmatprep.subr.bf16.mxu0 0
    %1061 = vmatpush1.bf16.msra.mxu0 0
    %1062 = vmatprep.subr.bf16.mxu0 0
    %1063 = vmatpush1.bf16.msra.mxu0 0
    %1064 = vmatprep.subr.bf16.mxu0 0
    %1065 = vmatpush1.bf16.msra.mxu0 0
    %1066 = vmatprep.mubr.bf16.mxu0 0
    %1067 = vmatmul.mubr.bf16.gmra.mrb[0].mxu0 %v1032
    %v1068 = vpop.f32.mrb[0].mxu0
    %v1069 = vadd.f32 0.0, %v1068
    %v1070 = vpop.f32.mrb[0].mxu0
    %v1071 = vpop.f32.mrb[0].mxu0
    %v1072 = vpop.f32.mrb[0].mxu0
    %1073 = vdwg.mxu0
    %v1074 = vadd.f32 %v1026, %v1069
    %v1075 = vxor.u32 %v1074, 2147483648
    %v1076 = vmul.f32 %v1075, 1.442695
    %v1077 = vpow.pop %v1076
    %v1078 = vadd.f32 %v1077, 1.0
    %v1079 = vrcp.pop %v1078
    %v1080 = vmul.f32 1.0, %v1079
    %v1081 = vtanh.pop %v1074
    %v1082 = vmul.f32 %v1080, %v1014
    %1084 = vrot.lane.b32.xlu0 %v1081, 32
    %v1085 = vpop.permute.xlu0 %1084
    %v1087 = vmul.f32 %v1080, %v1085
    %1089 = vrot.lane.b32.xlu0 %v1087, 32
    %v1090 = vpop.permute.xlu0 %1089
    %v1092 = vadd.f32 %v1082, %v1090
    %v1093 = vtanh.pop %v1092
    %1095 = vrot.lane.b32.xlu0 %v1093, 32
    %v1096 = vpop.permute.xlu0 %1095
    %v1098 = vmul.f32 %v1080, %v1096
    %1100 = vrot.lane.b32.xlu0 %v1098, 64
    %v1101 = vpop.permute.xlu0 %1100
    %1103 = vst.msk [vmem:[#allocation3 + $0x6] sm:$0x3] %vm189, %v1101
    %v1104 = vld [vmem:[#allocation2 + $0x8] sm:$0x3]
    %v1105 = vpack.c.bf16 %v1098, %v1098
    %1107 = vrot.lane.b32.xlu0 %v1105, 64
    %v1108 = vpop.permute.xlu0 %1107
    %v1110 = vsel %vm208, %v1108, 0
    %1112 = vmatprep.subr.bf16.mxu0 0
    %1113 = vmatpush1.bf16.msra.mxu0 %v867
    %1114 = vmatprep.subr.bf16.mxu0 0
    %1115 = vmatpush1.bf16.msra.mxu0 %v868
    %1116 = vmatprep.subr.bf16.mxu0 0
    %1117 = vmatpush1.bf16.msra.mxu0 0
    %1118 = vmatprep.subr.bf16.mxu0 0
    %1119 = vmatpush1.bf16.msra.mxu0 0
    %1120 = vmatprep.subr.bf16.mxu0 0
    %1121 = vmatpush1.bf16.msra.mxu0 0
    %1122 = vmatprep.subr.bf16.mxu0 0
    %1123 = vmatpush1.bf16.msra.mxu0 0
    %1124 = vmatprep.subr.bf16.mxu0 0
    %1125 = vmatpush1.bf16.msra.mxu0 0
    %1126 = vmatprep.subr.bf16.mxu0 0
    %1127 = vmatpush1.bf16.msra.mxu0 0
    %1128 = vmatprep.subr.bf16.mxu0 0
    %1129 = vmatpush1.bf16.msra.mxu0 0
    %1130 = vmatprep.subr.bf16.mxu0 0
    %1131 = vmatpush1.bf16.msra.mxu0 0
    %1132 = vmatprep.subr.bf16.mxu0 0
    %1133 = vmatpush1.bf16.msra.mxu0 0
    %1134 = vmatprep.subr.bf16.mxu0 0
    %1135 = vmatpush1.bf16.msra.mxu0 0
    %1136 = vmatprep.subr.bf16.mxu0 0
    %1137 = vmatpush1.bf16.msra.mxu0 0
    %1138 = vmatprep.subr.bf16.mxu0 0
    %1139 = vmatpush1.bf16.msra.mxu0 0
    %1140 = vmatprep.subr.bf16.mxu0 0
    %1141 = vmatpush1.bf16.msra.mxu0 0
    %1142 = vmatprep.subr.bf16.mxu0 0
    %1143 = vmatpush1.bf16.msra.mxu0 0
    %1144 = vmatprep.mubr.bf16.mxu0 0
    %1145 = vmatmul.mubr.bf16.gmra.mrb[0].mxu0 %v1110
    %v1146 = vpop.f32.mrb[0].mxu0
    %v1147 = vadd.f32 0.0, %v1146
    %v1148 = vpop.f32.mrb[0].mxu0
    %v1149 = vpop.f32.mrb[0].mxu0
    %v1150 = vpop.f32.mrb[0].mxu0
    %1151 = vdwg.mxu0
    %v1152 = vadd.f32 %v1104, %v1147
    %v1153 = vxor.u32 %v1152, 2147483648
    %v1154 = vmul.f32 %v1153, 1.442695
    %v1155 = vpow.pop %v1154
    %v1156 = vadd.f32 %v1155, 1.0
    %v1157 = vrcp.pop %v1156
    %v1158 = vmul.f32 1.0, %v1157
    %v1159 = vtanh.pop %v1152
    %v1160 = vmul.f32 %v1158, %v1092
    %1162 = vrot.lane.b32.xlu0 %v1159, 32
    %v1163 = vpop.permute.xlu0 %1162
    %v1165 = vmul.f32 %v1158, %v1163
    %1167 = vrot.lane.b32.xlu0 %v1165, 32
    %v1168 = vpop.permute.xlu0 %1167
    %v1170 = vadd.f32 %v1160, %v1168
    %v1171 = vtanh.pop %v1170
    %1173 = vrot.lane.b32.xlu0 %v1171, 32
    %v1174 = vpop.permute.xlu0 %1173
    %v1176 = vmul.f32 %v1158, %v1174
    %1178 = vrot.lane.b32.xlu0 %v1176, 64
    %v1179 = vpop.permute.xlu0 %1178
    %1181 = vst.msk [vmem:[#allocation3 + $0x8] sm:$0x3] %vm189, %v1179
    %v1182 = vld [vmem:[#allocation2 + $0xa] sm:$0x3]
    %v1183 = vpack.c.bf16 %v1176, %v1176
    %1185 = vrot.lane.b32.xlu0 %v1183, 64
    %v1186 = vpop.permute.xlu0 %1185
    %v1188 = vsel %vm208, %v1186, 0
    %1190 = vmatprep.subr.bf16.mxu0 0
    %1191 = vmatpush1.bf16.msra.mxu0 %v867
    %1192 = vmatprep.subr.bf16.mxu0 0
    %1193 = vmatpush1.bf16.msra.mxu0 %v868
    %1194 = vmatprep.subr.bf16.mxu0 0
    %1195 = vmatpush1.bf16.msra.mxu0 0
    %1196 = vmatprep.subr.bf16.mxu0 0
    %1197 = vmatpush1.bf16.msra.mxu0 0
    %1198 = vmatprep.subr.bf16.mxu0 0
    %1199 = vmatpush1.bf16.msra.mxu0 0
    %1200 = vmatprep.subr.bf16.mxu0 0
    %1201 = vmatpush1.bf16.msra.mxu0 0
    %1202 = vmatprep.subr.bf16.mxu0 0
    %1203 = vmatpush1.bf16.msra.mxu0 0
    %1204 = vmatprep.subr.bf16.mxu0 0
    %1205 = vmatpush1.bf16.msra.mxu0 0
    %1206 = vmatprep.subr.bf16.mxu0 0
    %1207 = vmatpush1.bf16.msra.mxu0 0
    %1208 = vmatprep.subr.bf16.mxu0 0
    %1209 = vmatpush1.bf16.msra.mxu0 0
    %1210 = vmatprep.subr.bf16.mxu0 0
    %1211 = vmatpush1.bf16.msra.mxu0 0
    %1212 = vmatprep.subr.bf16.mxu0 0
    %1213 = vmatpush1.bf16.msra.mxu0 0
    %1214 = vmatprep.subr.bf16.mxu0 0
    %1215 = vmatpush1.bf16.msra.mxu0 0
    %1216 = vmatprep.subr.bf16.mxu0 0
    %1217 = vmatpush1.bf16.msra.mxu0 0
    %1218 = vmatprep.subr.bf16.mxu0 0
    %1219 = vmatpush1.bf16.msra.mxu0 0
    %1220 = vmatprep.subr.bf16.mxu0 0
    %1221 = vmatpush1.bf16.msra.mxu0 0
    %1222 = vmatprep.mubr.bf16.mxu0 0
    %1223 = vmatmul.mubr.bf16.gmra.mrb[0].mxu0 %v1188
    %v1224 = vpop.f32.mrb[0].mxu0
    %v1225 = vadd.f32 0.0, %v1224
    %v1226 = vpop.f32.mrb[0].mxu0
    %v1227 = vpop.f32.mrb[0].mxu0
    %v1228 = vpop.f32.mrb[0].mxu0
    %1229 = vdwg.mxu0
    %v1230 = vadd.f32 %v1182, %v1225
    %v1231 = vxor.u32 %v1230, 2147483648
    %v1232 = vmul.f32 %v1231, 1.442695
    %v1233 = vpow.pop %v1232
    %v1234 = vadd.f32 %v1233, 1.0
    %v1235 = vrcp.pop %v1234
    %v1236 = vmul.f32 1.0, %v1235
    %v1237 = vtanh.pop %v1230
    %v1238 = vmul.f32 %v1236, %v1170
    %1240 = vrot.lane.b32.xlu0 %v1237, 32
    %v1241 = vpop.permute.xlu0 %1240
    %v1243 = vmul.f32 %v1236, %v1241
    %1245 = vrot.lane.b32.xlu0 %v1243, 32
    %v1246 = vpop.permute.xlu0 %1245
    %v1248 = vadd.f32 %v1238, %v1246
    %v1249 = vtanh.pop %v1248
    %1251 = vrot.lane.b32.xlu0 %v1249, 32
    %v1252 = vpop.permute.xlu0 %1251
    %v1254 = vmul.f32 %v1236, %v1252
    %1256 = vrot.lane.b32.xlu0 %v1254, 64
    %v1257 = vpop.permute.xlu0 %1256
    %1259 = vst.msk [vmem:[#allocation3 + $0xa] sm:$0x3] %vm189, %v1257
    %v1260 = vld [vmem:[#allocation2 + $0xc] sm:$0x3]
    %v1261 = vpack.c.bf16 %v1254, %v1254
    %1263 = vrot.lane.b32.xlu0 %v1261, 64
    %v1264 = vpop.permute.xlu0 %1263
    %v1266 = vsel %vm208, %v1264, 0
    %1268 = vmatprep.subr.bf16.mxu0 0
    %1269 = vmatpush1.bf16.msra.mxu0 %v867
    %1270 = vmatprep.subr.bf16.mxu0 0
    %1271 = vmatpush1.bf16.msra.mxu0 %v868
    %1272 = vmatprep.subr.bf16.mxu0 0
    %1273 = vmatpush1.bf16.msra.mxu0 0
    %1274 = vmatprep.subr.bf16.mxu0 0
    %1275 = vmatpush1.bf16.msra.mxu0 0
    %1276 = vmatprep.subr.bf16.mxu0 0
    %1277 = vmatpush1.bf16.msra.mxu0 0
    %1278 = vmatprep.subr.bf16.mxu0 0
    %1279 = vmatpush1.bf16.msra.mxu0 0
    %1280 = vmatprep.subr.bf16.mxu0 0
    %1281 = vmatpush1.bf16.msra.mxu0 0
    %1282 = vmatprep.subr.bf16.mxu0 0
    %1283 = vmatpush1.bf16.msra.mxu0 0
    %1284 = vmatprep.subr.bf16.mxu0 0
    %1285 = vmatpush1.bf16.msra.mxu0 0
    %1286 = vmatprep.subr.bf16.mxu0 0
    %1287 = vmatpush1.bf16.msra.mxu0 0
    %1288 = vmatprep.subr.bf16.mxu0 0
    %1289 = vmatpush1.bf16.msra.mxu0 0
    %1290 = vmatprep.subr.bf16.mxu0 0
    %1291 = vmatpush1.bf16.msra.mxu0 0
    %1292 = vmatprep.subr.bf16.mxu0 0
    %1293 = vmatpush1.bf16.msra.mxu0 0
    %1294 = vmatprep.subr.bf16.mxu0 0
    %1295 = vmatpush1.bf16.msra.mxu0 0
    %1296 = vmatprep.subr.bf16.mxu0 0
    %1297 = vmatpush1.bf16.msra.mxu0 0
    %1298 = vmatprep.subr.bf16.mxu0 0
    %1299 = vmatpush1.bf16.msra.mxu0 0
    %1300 = vmatprep.mubr.bf16.mxu0 0
    %1301 = vmatmul.mubr.bf16.gmra.mrb[0].mxu0 %v1266
    %v1302 = vpop.f32.mrb[0].mxu0
    %v1303 = vadd.f32 0.0, %v1302
    %v1304 = vpop.f32.mrb[0].mxu0
    %v1305 = vpop.f32.mrb[0].mxu0
    %v1306 = vpop.f32.mrb[0].mxu0
    %1307 = vdwg.mxu0
    %v1308 = vadd.f32 %v1260, %v1303
    %v1309 = vxor.u32 %v1308, 2147483648
    %v1310 = vmul.f32 %v1309, 1.442695
    %v1311 = vpow.pop %v1310
    %v1312 = vadd.f32 %v1311, 1.0
    %v1313 = vrcp.pop %v1312
    %v1314 = vmul.f32 1.0, %v1313
    %v1315 = vtanh.pop %v1308
    %v1316 = vmul.f32 %v1314, %v1248
    %1318 = vrot.lane.b32.xlu0 %v1315, 32
    %v1319 = vpop.permute.xlu0 %1318
    %v1321 = vmul.f32 %v1314, %v1319
    %1323 = vrot.lane.b32.xlu0 %v1321, 32
    %v1324 = vpop.permute.xlu0 %1323
    %v1326 = vadd.f32 %v1316, %v1324
    %v1327 = vtanh.pop %v1326
    %1329 = vrot.lane.b32.xlu0 %v1327, 32
    %v1330 = vpop.permute.xlu0 %1329
    %v1332 = vmul.f32 %v1314, %v1330
    %1334 = vrot.lane.b32.xlu0 %v1332, 64
    %v1335 = vpop.permute.xlu0 %1334
    %1337 = vst.msk [vmem:[#allocation3 + $0xc] sm:$0x3] %vm189, %v1335
    %v1338 = vld [vmem:[#allocation2 + $0xe] sm:$0x3]
    %v1339 = vpack.c.bf16 %v1332, %v1332
    %1341 = vrot.lane.b32.xlu0 %v1339, 64
    %v1342 = vpop.permute.xlu0 %1341
    %v1344 = vsel %vm208, %v1342, 0
    %1346 = vmatprep.subr.bf16.mxu0 0
    %1347 = vmatpush1.bf16.msra.mxu0 %v867
    %1348 = vmatprep.subr.bf16.mxu0 0
    %1349 = vmatpush1.bf16.msra.mxu0 %v868
    %1350 = vmatprep.subr.bf16.mxu0 0
    %1351 = vmatpush1.bf16.msra.mxu0 0
    %1352 = vmatprep.subr.bf16.mxu0 0
    %1353 = vmatpush1.bf16.msra.mxu0 0
    %1354 = vmatprep.subr.bf16.mxu0 0
    %1355 = vmatpush1.bf16.msra.mxu0 0
    %1356 = vmatprep.subr.bf16.mxu0 0
    %1357 = vmatpush1.bf16.msra.mxu0 0
    %1358 = vmatprep.subr.bf16.mxu0 0
    %1359 = vmatpush1.bf16.msra.mxu0 0
    %1360 = vmatprep.subr.bf16.mxu0 0
    %1361 = vmatpush1.bf16.msra.mxu0 0
    %1362 = vmatprep.subr.bf16.mxu0 0
    %1363 = vmatpush1.bf16.msra.mxu0 0
    %1364 = vmatprep.subr.bf16.mxu0 0
    %1365 = vmatpush1.bf16.msra.mxu0 0
    %1366 = vmatprep.subr.bf16.mxu0 0
    %1367 = vmatpush1.bf16.msra.mxu0 0
    %1368 = vmatprep.subr.bf16.mxu0 0
    %1369 = vmatpush1.bf16.msra.mxu0 0
    %1370 = vmatprep.subr.bf16.mxu0 0
    %1371 = vmatpush1.bf16.msra.mxu0 0
    %1372 = vmatprep.subr.bf16.mxu0 0
    %1373 = vmatpush1.bf16.msra.mxu0 0
    %1374 = vmatprep.subr.bf16.mxu0 0
    %1375 = vmatpush1.bf16.msra.mxu0 0
    %1376 = vmatprep.subr.bf16.mxu0 0
    %1377 = vmatpush1.bf16.msra.mxu0 0
    %1378 = vmatprep.mubr.bf16.mxu0 0
    %1379 = vmatmul.mubr.bf16.gmra.mrb[0].mxu0 %v1344
    %v1380 = vpop.f32.mrb[0].mxu0
    %v1381 = vadd.f32 0.0, %v1380
    %v1382 = vpop.f32.mrb[0].mxu0
    %v1383 = vpop.f32.mrb[0].mxu0
    %v1384 = vpop.f32.mrb[0].mxu0
    %1385 = vdwg.mxu0
    %v1386 = vadd.f32 %v1338, %v1381
    %v1387 = vxor.u32 %v1386, 2147483648
    %v1388 = vmul.f32 %v1387, 1.442695
    %v1389 = vpow.pop %v1388
    %v1390 = vadd.f32 %v1389, 1.0
    %v1391 = vrcp.pop %v1390
    %v1392 = vmul.f32 1.0, %v1391
    %v1393 = vtanh.pop %v1386
    %v1394 = vmul.f32 %v1392, %v1326
    %1396 = vrot.lane.b32.xlu0 %v1393, 32
    %v1397 = vpop.permute.xlu0 %1396
    %v1399 = vmul.f32 %v1392, %v1397
    %1401 = vrot.lane.b32.xlu0 %v1399, 32
    %v1402 = vpop.permute.xlu0 %1401
    %v1404 = vadd.f32 %v1394, %v1402
    %v1405 = vtanh.pop %v1404
    %1407 = vrot.lane.b32.xlu0 %v1405, 32
    %v1408 = vpop.permute.xlu0 %1407
    %v1410 = vmul.f32 %v1392, %v1408
    %1412 = vrot.lane.b32.xlu0 %v1410, 64
    %v1413 = vpop.permute.xlu0 %1412
    %1415 = vst.msk [vmem:[#allocation3 + $0xe] sm:$0x3] %vm189, %v1413
    %v1416 = vld [vmem:[#allocation3] sm:$0xff]
    %v1417 = vld [vmem:[#allocation3 + $0x8] sm:$0xff]
    %v1418 = vpack.c.bf16 %v1417, %v1416
    %v1419 = vld [vmem:[%s7] sm:$0xf]
    %v1420 = vld [vmem:[%s7 + $0x4] sm:$0xf]
    %v1421 = vld [vmem:[%s7 + $0x8] sm:$0xf]
    %v1422 = vld [vmem:[%s7 + $0xc] sm:$0xf]
    %v1423 = vld [vmem:[%s8] sm:$0x1]
    %v1425 = vlaneseq
    %v1426 = vshrl.u32 %v1425, 7
    %v1427 = vsub.s32 0, %v1426
    %v1428 = vrot.slane %v1423, %v1427
    %v1434 = vunpack.c.l.b16 %v1419
    %v1435 = vunpack.c.l.b16 %v1420
    %v1436 = vunpack.c.l.b16 %v1421
    %v1437 = vunpack.c.l.b16 %v1422
    %v1438 = vpack.c.b16 %v1435, %v1434
    %v1439 = vpack.c.b16 %v1437, %v1436
    %v1443 = vsel %vm208, %v1418, 0
    %1445 = vmatprep.subr.bf16.mxu0 0
    %1446 = vmatpush1.bf16.msra.mxu0 %v1438
    %1447 = vmatprep.subr.bf16.mxu0 0
    %1448 = vmatpush1.bf16.msra.mxu0 %v1439
    %1449 = vmatprep.subr.bf16.mxu0 0
    %1450 = vmatpush1.bf16.msra.mxu0 0
    %1451 = vmatprep.subr.bf16.mxu0 0
    %1452 = vmatpush1.bf16.msra.mxu0 0
    %1453 = vmatprep.subr.bf16.mxu0 0
    %1454 = vmatpush1.bf16.msra.mxu0 0
    %1455 = vmatprep.subr.bf16.mxu0 0
    %1456 = vmatpush1.bf16.msra.mxu0 0
    %1457 = vmatprep.subr.bf16.mxu0 0
    %1458 = vmatpush1.bf16.msra.mxu0 0
    %1459 = vmatprep.subr.bf16.mxu0 0
    %1460 = vmatpush1.bf16.msra.mxu0 0
    %1461 = vmatprep.subr.bf16.mxu0 0
    %1462 = vmatpush1.bf16.msra.mxu0 0
    %1463 = vmatprep.subr.bf16.mxu0 0
    %1464 = vmatpush1.bf16.msra.mxu0 0
    %1465 = vmatprep.subr.bf16.mxu0 0
    %1466 = vmatpush1.bf16.msra.mxu0 0
    %1467 = vmatprep.subr.bf16.mxu0 0
    %1468 = vmatpush1.bf16.msra.mxu0 0
    %1469 = vmatprep.subr.bf16.mxu0 0
    %1470 = vmatpush1.bf16.msra.mxu0 0
    %1471 = vmatprep.subr.bf16.mxu0 0
    %1472 = vmatpush1.bf16.msra.mxu0 0
    %1473 = vmatprep.subr.bf16.mxu0 0
    %1474 = vmatpush1.bf16.msra.mxu0 0
    %1475 = vmatprep.subr.bf16.mxu0 0
    %1476 = vmatpush1.bf16.msra.mxu0 0
    %1477 = vmatprep.mubr.bf16.mxu0 0
    %1478 = vmatmul.mubr.bf16.gmra.mrb[0].mxu0 %v1443
    %v1479 = vpop.f32.mrb[0].mxu0
    %v1480 = vadd.f32 %v1428, %v1479
    %v1481 = vpop.f32.mrb[0].mxu0
    %v1482 = vpop.f32.mrb[0].mxu0
    %v1483 = vadd.f32 %v1428, %v1482
    %v1484 = vpop.f32.mrb[0].mxu0
    %1485 = vdwg.mxu0
    %1486 = vst [vmem:[#allocation13] sm:$0xff] %v1480
    %1487 = vst [vmem:[#allocation13 + $0x8] sm:$0xff] %v1483
    // Predicated region
    $region58: #{tpu_custom_call.1} parent=1 // pred_check
      _
    $region59: #{tpu_custom_call.1} parent=1 // pred_check_branch
      %1489 = sbr.rel (0) target = $region61
    $region60: #{tpu_custom_call.1} parent=1 // pred_region
      %s1491 = ssub.s32 256, 256
      %1492 = vsyncadd [#allocation6], %s1491
      %s1493 = sshll.u32 [#allocation13], 4
      %s1494 = int_to_ptr.vmem [resolvable:$true] %s1493
      %1499 = dma.vmem_to_hbm [thread:$0]  %s1494, 256, %s9, [#allocation6], 128, 128, 8
    $region61: #{tpu_custom_call.1} parent=1 // pred_fallthru
      _
    // Predicated region
    $region62: #{tpu_custom_call.1} parent=1 // pred_check
      _
    $region63: #{tpu_custom_call.1} parent=1 // pred_check_branch
      %1501 = sbr.rel (0) target = $region65
    $region64: #{tpu_custom_call.1} parent=1 // pred_region
      %1502 = dma.done [#allocation6], 256
    $region65: #{tpu_custom_call.1} parent=1 // pred_fallthru
      _
    %1503 = vsyncpa [#allocation5], 1
    %1504 = vsyncpa [#allocation8], 1
    %1505 = vsyncpa [#allocation11], 1
    %1506 = vsyncpa [#allocation6], 1

</llo_original>
